<compile_context>
chip_gen: v5e
topology: v5e:2x2
jax: 0.10.0
libtpu: 0.0.40
codegen_flags: <defaults>
</compile_context>

<pallas_src>
import functools

import jax
import jax.numpy as jnp
from jax.experimental import pallas as pl
from jax.experimental.pallas import tpu as pltpu


D_IN = 512
D_H1 = 1024
D_H2 = 256


def _round_up(x, m):
    return ((x + m - 1) // m) * m


def _vmem_capacity_bytes():
    # Conservative fallback = v7x per-TensorCore VMEM (64 MiB); v5e/v6e
    # report 128 MiB and get correspondingly larger tiles.
    try:
        cap = getattr(pltpu.get_tpu_info(), "vmem_capacity_bytes", None)
        if cap:
            return int(cap)
    except Exception:
        pass
    return 64 << 20


def ac_forward_kernel(x_ref, w1_ref, b1_ref, w2_ref, b2_ref, w3_ref, b3_ref,
                      out_ref, acc_ref, *, seq_len, tile_t, mask_t):
    t = pl.program_id(1)

    @pl.when(t == 0)
    def _init():
        acc_ref[...] = jnp.zeros_like(acc_ref)

    # Sequence-sum accumulation in f32; x arrives in its native dtype.
    xs = x_ref[...].astype(jnp.float32)                       # (TB, TT, 512)
    if mask_t:
        # Ragged last T tile: x is NOT padded in HBM, so rows past the true
        # sequence length are undefined and must be zeroed before the sum.
        t_idx = jax.lax.broadcasted_iota(jnp.int32, (1, tile_t, D_IN), 1)
        xs = jnp.where(t_idx < (seq_len - t * tile_t), xs, 0.0)
    # TODO(synk): on v7x a first-level pairwise add in bf16 would trim ~25%
    # of the VALU work of this reduction; kept as a plain f32 sum (it stays
    # hidden under the x DMA on v5e/v6e).
    acc_ref[...] += jnp.sum(xs, axis=1)

    @pl.when(t == pl.num_programs(1) - 1)
    def _finalize():
        cdt = w2_ref.dtype                                    # MXU compute dtype
        xm = acc_ref[...] * (1.0 / seq_len)                   # f32 mean (TB, 512)

        # fc1 entirely in f32 (w1 is fed as f32) -> full precision of the mean.
        h1 = jnp.dot(xm, w1_ref[...], preferred_element_type=jnp.float32)
        h1 = jnp.maximum(h1 + b1_ref[...], 0.0)

        h2 = jnp.dot(h1.astype(cdt), w2_ref[...],
                     preferred_element_type=jnp.float32)
        h2 = jnp.maximum(h2 + b2_ref[...], 0.0)

        logits = jnp.dot(h2.astype(cdt), w3_ref[...],
                         preferred_element_type=jnp.float32) + b3_ref[...]
        out_ref[...] = logits.astype(out_ref.dtype)


@functools.partial(jax.jit, static_argnames=("dtype",))
def ac_forward(x, params, *, dtype=jnp.bfloat16):
    """x: (B, T, 512). params: dict of w1,b1,w2,b2,w3,b3 (f32)."""
    B, T, D = x.shape
    assert D == D_IN, f"feature dim must be {D_IN}"

    w1, b1 = params["w1"], params["b1"]
    w2, b2 = params["w2"], params["b2"]
    w3, b3 = params["w3"], params["b3"]
    n_accents = w3.shape[1]
    n_pad = _round_up(n_accents, 128)          # lane-dense fc3 output

    x_isz = jnp.dtype(x.dtype).itemsize
    w_isz = jnp.dtype(dtype).itemsize
    vmem_cap = _vmem_capacity_bytes()

    # --- batch tiling: minimize padding; >=2 tiles when B is big enough so
    # the "parallel" axis can be split across v7x's two TensorCores.
    n_b_tiles = pl.cdiv(B, 256)
    if B > 16:
        n_b_tiles = max(n_b_tiles, 2)
    TILE_B = _round_up(pl.cdiv(B, n_b_tiles), 8)

    # --- sequence tiling: largest multiple of 8 whose double-buffered x
    # stream fits ~half of this generation's VMEM, capped at 128.
    tt_cap = (vmem_cap // 2) // (2 * TILE_B * D_IN * x_isz)
    tt_cap = max(8, (tt_cap // 8) * 8)
    TILE_T = min(_round_up(T, 8), tt_cap, 128)
    mask_t = (T % TILE_T) != 0

    grid = (pl.cdiv(B, TILE_B), pl.cdiv(T, TILE_T))

    # --- trace-time operand prep (weights only; x is untouched) -------------
    w1c = w1.astype(jnp.float32)               # fc1 stays f32
    w2c = w2.astype(dtype)
    w3c = jnp.pad(w3.astype(jnp.float32),
                  ((0, 0), (0, n_pad - n_accents))).astype(dtype)
    b1c = b1.reshape(1, -1).astype(jnp.float32)
    b2c = b2.reshape(1, -1).astype(jnp.float32)
    b3c = jnp.pad(b3.reshape(1, -1).astype(jnp.float32),
                  ((0, 0), (0, n_pad - n_accents)))

    # --- VMEM budget: double-buffered working set + 25% headroom ------------
    x_tile_b = TILE_B * TILE_T * D_IN * x_isz
    w_b = D_IN * D_H1 * 4 + (D_H1 * D_H2 + D_H2 * n_pad) * w_isz
    bias_b = (D_H1 + D_H2 + n_pad) * 4
    out_tile_b = TILE_B * n_pad * 4
    scratch_b = TILE_B * D_IN * 4
    need = 2 * (x_tile_b + w_b + bias_b + out_tile_b) + scratch_b
    vmem_limit = int(min(max(int(need * 1.25), 16 << 20), (vmem_cap * 3) // 4))

    # --- cost estimate so XLA schedules producers/consumers around this
    # long, memory-bound custom call.
    flops = 2 * B * (D_IN * D_H1 + D_H1 * D_H2 + D_H2 * n_pad) + 2 * B * T * D_IN
    bytes_accessed = (B * T * D_IN * x_isz
                      + D_IN * D_H1 * 4
                      + (D_H1 * D_H2 + D_H2 * n_pad) * w_isz
                      + bias_b + B * n_pad * 4)

    weight_spec = lambda shape: pl.BlockSpec(shape, lambda b, t: (0, 0))
    kernel = functools.partial(ac_forward_kernel,
                               seq_len=T, tile_t=TILE_T, mask_t=mask_t)

    out = pl.pallas_call(
        kernel,
        out_shape=jax.ShapeDtypeStruct((B, n_pad), jnp.float32),
        grid_spec=pltpu.PrefetchScalarGridSpec(
            num_scalar_prefetch=0,
            grid=grid,
            in_specs=[
                pl.BlockSpec((TILE_B, TILE_T, D_IN), lambda b, t: (b, t, 0)),
                weight_spec((D_IN, D_H1)),
                weight_spec((1, D_H1)),
                weight_spec((D_H1, D_H2)),
                weight_spec((1, D_H2)),
                weight_spec((D_H2, n_pad)),
                weight_spec((1, n_pad)),
            ],
            out_specs=pl.BlockSpec((TILE_B, n_pad), lambda b, t: (b, 0)),
            scratch_shapes=[pltpu.VMEM((TILE_B, D_IN), jnp.float32)],
        ),
        compiler_params=pltpu.CompilerParams(
            dimension_semantics=("parallel", "arbitrary"),
            vmem_limit_bytes=vmem_limit,
        ),
        cost_estimate=pl.CostEstimate(flops=int(flops), transcendentals=0,
                                      bytes_accessed=int(bytes_accessed)),
    )(x, w1c, b1c, w2c, b2c, w3c, b3c)

    return out[:, :n_accents]


def init_params(key, n_accents):
    ks = jax.random.split(key, 6)

    def linear(kw, kb, fan_in, fan_out):
        scale = 1.0 / jnp.sqrt(jnp.float32(fan_in))
        w = jax.random.uniform(kw, (fan_in, fan_out), jnp.float32, -scale, scale)
        b = jax.random.uniform(kb, (fan_out,), jnp.float32, -scale, scale)
        return w, b

    w1, b1 = linear(ks[0], ks[1], D_IN, D_H1)
    w2, b2 = linear(ks[2], ks[3], D_H1, D_H2)
    w3, b3 = linear(ks[4], ks[5], D_H2, n_accents)
    return {"w1": w1, "b1": b1, "w2": w2, "b2": b2, "w3": w3, "b3": b3}


def ac_forward_ref(x, params):
    xm = jnp.mean(x, axis=1)
    h1 = jnp.maximum(xm @ params["w1"] + params["b1"], 0.0)
    h2 = jnp.maximum(h1 @ params["w2"] + params["b2"], 0.0)
    return h2 @ params["w3"] + params["b3"]


if __name__ == "__main__":
    key = jax.random.PRNGKey(0)
    kx, kp = jax.random.split(key)

    B, T, D = 2, 8, 512          # batch=2, seq=8, feature=512 (fixed by fc1)
    n_accents = 8

    x = jax.random.normal(kx, (B, T, D), jnp.float32)
    params = init_params(kp, n_accents)

    out = jax.block_until_ready(ac_forward(x, params))
    ref = ac_forward_ref(x, params)

    assert out.shape == (B, n_accents)
    # fc1 in f32, fc2/fc3 in bf16 (f32 accumulation) vs pure-f32 reference.
    assert jnp.allclose(out, ref, atol=2e-2, rtol=2e-2), (out, ref)

    print("KERNEL_OK")
</pallas_src>

<mosaic_0001>
module attributes {stable_mosaic.version = 11 : i64} {
  func.func @ac_forward_kernel(%arg0: i32, %arg1: i32, %arg2: memref<8x8x512xf32, #tpu.memory_space<vmem>>, %arg3: memref<512x1024xf32, #tpu.memory_space<vmem>>, %arg4: memref<1x1024xf32, #tpu.memory_space<vmem>>, %arg5: memref<1024x256xbf16, #tpu.memory_space<vmem>>, %arg6: memref<1x256xf32, #tpu.memory_space<vmem>>, %arg7: memref<256x128xbf16, #tpu.memory_space<vmem>>, %arg8: memref<1x128xf32, #tpu.memory_space<vmem>>, %arg9: memref<8x128xf32, #tpu.memory_space<vmem>>, %arg10: memref<8x512xf32, #tpu.memory_space<vmem>>) attributes {dimension_semantics = [#tpu.dimension_semantics<parallel>, #tpu.dimension_semantics<arbitrary>], iteration_bounds = array<i64: 1, 1>, scalar_prefetch = 0 : i64, scratch_operands = 1 : i64, tpu.core_type = #tpu.core_type<tc>, window_params = [{transform_indices = @transform_0, window_bounds = array<i64: 8, 8, 512>}, {pipeline_mode = #tpu.pipeline_mode<synchronous>, transform_indices = @transform_1, window_bounds = array<i64: 512, 1024>}, {pipeline_mode = #tpu.pipeline_mode<synchronous>, transform_indices = @transform_2, window_bounds = array<i64: 1, 1024>}, {pipeline_mode = #tpu.pipeline_mode<synchronous>, transform_indices = @transform_3, window_bounds = array<i64: 1024, 256>}, {pipeline_mode = #tpu.pipeline_mode<synchronous>, transform_indices = @transform_4, window_bounds = array<i64: 1, 256>}, {pipeline_mode = #tpu.pipeline_mode<synchronous>, transform_indices = @transform_5, window_bounds = array<i64: 256, 128>}, {pipeline_mode = #tpu.pipeline_mode<synchronous>, transform_indices = @transform_6, window_bounds = array<i64: 1, 128>}, {transform_indices = @transform_7, window_bounds = array<i64: 8, 128>}]} {
    %c0_i32 = arith.constant 0 : i32
    %0 = arith.cmpi eq, %arg1, %c0_i32 : i32
    %1 = arith.extui %0 : i1 to i32
    %c0_i32_0 = arith.constant 0 : i32
    %2 = arith.cmpi ne, %1, %c0_i32_0 : i32
    scf.if %2 {
      %cst_9 = arith.constant 0.000000e+00 : f32
      %11 = vector.broadcast %cst_9 : f32 to vector<8x512xf32>
      %c0_10 = arith.constant 0 : index
      %c0_11 = arith.constant 0 : index
      %12 = vector.load %arg10[%c0_10, %c0_11] : memref<8x512xf32, #tpu.memory_space<vmem>>, vector<8x512xf32>
      tpu.vector_store %arg10[%c0_10, %c0_11], %11 {strides = array<i32>} : memref<8x512xf32, #tpu.memory_space<vmem>>, vector<8x512xf32>,
    } else {
    }
    %c0 = arith.constant 0 : index
    %c0_1 = arith.constant 0 : index
    %c0_2 = arith.constant 0 : index
    %3 = vector.load %arg2[%c0, %c0_1, %c0_2] : memref<8x8x512xf32, #tpu.memory_space<vmem>>, vector<8x8x512xf32>
    %c0_3 = arith.constant 0 : index
    %c0_4 = arith.constant 0 : index
    %4 = vector.load %arg10[%c0_3, %c0_4] : memref<8x512xf32, #tpu.memory_space<vmem>>, vector<8x512xf32>
    %cst = arith.constant dense<0.000000e+00> : vector<8x512xf32>
    %5 = vector.multi_reduction <add>, %3, %cst [1] : vector<8x8x512xf32> to vector<8x512xf32>
    %6 = arith.addf %4, %5 : vector<8x512xf32>
    %c0_5 = arith.constant 0 : index
    %c0_6 = arith.constant 0 : index
    %7 = vector.load %arg10[%c0_5, %c0_6] : memref<8x512xf32, #tpu.memory_space<vmem>>, vector<8x512xf32>
    tpu.vector_store %arg10[%c0_5, %c0_6], %6 {strides = array<i32>} : memref<8x512xf32, #tpu.memory_space<vmem>>, vector<8x512xf32>,
    %c0_i32_7 = arith.constant 0 : i32
    %8 = arith.cmpi eq, %arg1, %c0_i32_7 : i32
    %9 = arith.extui %8 : i1 to i32
    %c0_i32_8 = arith.constant 0 : i32
    %10 = arith.cmpi ne, %9, %c0_i32_8 : i32
    scf.if %10 {
      %c0_9 = arith.constant 0 : index
      %c0_10 = arith.constant 0 : index
      %11 = vector.load %arg10[%c0_9, %c0_10] : memref<8x512xf32, #tpu.memory_space<vmem>>, vector<8x512xf32>
      %cst_11 = arith.constant 1.250000e-01 : f32
      %12 = vector.broadcast %cst_11 : f32 to vector<8x512xf32>
      %13 = arith.mulf %11, %12 : vector<8x512xf32>
      %c0_12 = arith.constant 0 : index
      %c0_13 = arith.constant 0 : index
      %14 = vector.load %arg3[%c0_12, %c0_13] : memref<512x1024xf32, #tpu.memory_space<vmem>>, vector<512x1024xf32>
      %cst_14 = arith.constant dense<0.000000e+00> : vector<8x1024xf32>
      %15 = tpu.matmul %13, %14, %cst_14 {dimension_numbers = #tpu.dot_dimension_numbers<[1], [0], [0], [1], [0, 0, 1, 1], [], []>} : vector<8x512xf32>, vector<512x1024xf32>, vector<8x1024xf32> -> vector<8x1024xf32>
      %c0_15 = arith.constant 0 : index
      %c0_16 = arith.constant 0 : index
      %16 = vector.load %arg4[%c0_15, %c0_16] : memref<1x1024xf32, #tpu.memory_space<vmem>>, vector<1x1024xf32>
      %17 = vector.broadcast %16 : vector<1x1024xf32> to vector<8x1024xf32>
      %18 = arith.addf %15, %17 : vector<8x1024xf32>
      %cst_17 = arith.constant 0.000000e+00 : f32
      %19 = vector.broadcast %cst_17 : f32 to vector<8x1024xf32>
      %20 = arith.maximumf %18, %19 : vector<8x1024xf32>
      %21 = arith.truncf %20 : vector<8x1024xf32> to vector<8x1024xbf16>
      %c0_18 = arith.constant 0 : index
      %c0_19 = arith.constant 0 : index
      %22 = vector.load %arg5[%c0_18, %c0_19] : memref<1024x256xbf16, #tpu.memory_space<vmem>>, vector<1024x256xbf16>
      %cst_20 = arith.constant dense<0.000000e+00> : vector<8x256xf32>
      %23 = tpu.matmul %21, %22, %cst_20 {dimension_numbers = #tpu.dot_dimension_numbers<[1], [0], [0], [1], [0, 0, 1, 1], [], []>} : vector<8x1024xbf16>, vector<1024x256xbf16>, vector<8x256xf32> -> vector<8x256xf32>
      %c0_21 = arith.constant 0 : index
      %c0_22 = arith.constant 0 : index
      %24 = vector.load %arg6[%c0_21, %c0_22] : memref<1x256xf32, #tpu.memory_space<vmem>>, vector<1x256xf32>
      %25 = vector.broadcast %24 : vector<1x256xf32> to vector<8x256xf32>
      %26 = arith.addf %23, %25 : vector<8x256xf32>
      %cst_23 = arith.constant 0.000000e+00 : f32
      %27 = vector.broadcast %cst_23 : f32 to vector<8x256xf32>
      %28 = arith.maximumf %26, %27 : vector<8x256xf32>
      %29 = arith.truncf %28 : vector<8x256xf32> to vector<8x256xbf16>
      %c0_24 = arith.constant 0 : index
      %c0_25 = arith.constant 0 : index
      %30 = vector.load %arg7[%c0_24, %c0_25] : memref<256x128xbf16, #tpu.memory_space<vmem>>, vector<256x128xbf16>
      %cst_26 = arith.constant dense<0.000000e+00> : vector<8x128xf32>
      %31 = tpu.matmul %29, %30, %cst_26 {dimension_numbers = #tpu.dot_dimension_numbers<[1], [0], [0], [1], [0, 0, 1, 1], [], []>} : vector<8x256xbf16>, vector<256x128xbf16>, vector<8x128xf32> -> vector<8x128xf32>
      %c0_27 = arith.constant 0 : index
      %c0_28 = arith.constant 0 : index
      %32 = vector.load %arg8[%c0_27, %c0_28] : memref<1x128xf32, #tpu.memory_space<vmem>>, vector<1x128xf32>
      %33 = vector.broadcast %32 : vector<1x128xf32> to vector<8x128xf32>
      %34 = arith.addf %31, %33 : vector<8x128xf32>
      %c0_29 = arith.constant 0 : index
      %c0_30 = arith.constant 0 : index
      %35 = vector.load %arg9[%c0_29, %c0_30] : memref<8x128xf32, #tpu.memory_space<vmem>>, vector<8x128xf32>
      tpu.vector_store %arg9[%c0_29, %c0_30], %34 {strides = array<i32>} : memref<8x128xf32, #tpu.memory_space<vmem>>, vector<8x128xf32>,
    } else {
    }
    return
  }
  func.func @transform_0(%arg0: i32, %arg1: i32) -> (i32, i32, i32) {
    %c0_i32 = arith.constant 0 : i32
    %c0_i32_0 = arith.constant 0 : i32
    return %arg0, %arg1, %c0_i32 : i32, i32, i32
  }
  func.func @transform_1(%arg0: i32, %arg1: i32) -> (i32, i32) {
    %c0_i32 = arith.constant 0 : i32
    %c0_i32_0 = arith.constant 0 : i32
    %c0_i32_1 = arith.constant 0 : i32
    return %c0_i32, %c0_i32_0 : i32, i32
  }
  func.func @transform_2(%arg0: i32, %arg1: i32) -> (i32, i32) {
    %c0_i32 = arith.constant 0 : i32
    %c0_i32_0 = arith.constant 0 : i32
    %c0_i32_1 = arith.constant 0 : i32
    return %c0_i32, %c0_i32_0 : i32, i32
  }
  func.func @transform_3(%arg0: i32, %arg1: i32) -> (i32, i32) {
    %c0_i32 = arith.constant 0 : i32
    %c0_i32_0 = arith.constant 0 : i32
    %c0_i32_1 = arith.constant 0 : i32
    return %c0_i32, %c0_i32_0 : i32, i32
  }
  func.func @transform_4(%arg0: i32, %arg1: i32) -> (i32, i32) {
    %c0_i32 = arith.constant 0 : i32
    %c0_i32_0 = arith.constant 0 : i32
    %c0_i32_1 = arith.constant 0 : i32
    return %c0_i32, %c0_i32_0 : i32, i32
  }
  func.func @transform_5(%arg0: i32, %arg1: i32) -> (i32, i32) {
    %c0_i32 = arith.constant 0 : i32
    %c0_i32_0 = arith.constant 0 : i32
    %c0_i32_1 = arith.constant 0 : i32
    return %c0_i32, %c0_i32_0 : i32, i32
  }
  func.func @transform_6(%arg0: i32, %arg1: i32) -> (i32, i32) {
    %c0_i32 = arith.constant 0 : i32
    %c0_i32_0 = arith.constant 0 : i32
    %c0_i32_1 = arith.constant 0 : i32
    return %c0_i32, %c0_i32_0 : i32, i32
  }
  func.func @transform_7(%arg0: i32, %arg1: i32) -> (i32, i32) {
    %c0_i32 = arith.constant 0 : i32
    %c0_i32_0 = arith.constant 0 : i32
    return %arg0, %c0_i32 : i32, i32
  }
}

</mosaic_0001>

<llo_original>
// kernel: ac_forward.1
$region0: #{ac_forward.1}
  #allocation0 [shape = 'u32[]', space=smem, size = 0x4, offset = 0x4, fixed_abs, tag = 'smem constant byte address 0x4 - core index']
  #allocation1 [shape = 'u32[72,128]{1,0:T(1,128)}', space=vmem, size = 0x9000, scoped, tag = 'internal scratch']
  #allocation2 [shape = 'f32[8,512]{1,0:T(8,128)}', space=vmem, size = 0x4000, scoped, tag = 'scratch operand']
  %s0 = inlined_call_operand.hbm [shape: f32[2,8,512], index: 0, kind: input, shape index: {}]
  %s1 = inlined_call_operand.hbm [shape: f32[512,1024], index: 1, kind: input, shape index: {}]
  %s2 = inlined_call_operand.hbm [shape: f32[1,1024], index: 2, kind: input, shape index: {}]
  %s3 = inlined_call_operand.vmem [shape: bf16[1024,256], index: 3, kind: input, shape index: {}]
  %s4 = inlined_call_operand.hbm [shape: f32[1,256], index: 4, kind: input, shape index: {}]
  %s5 = inlined_call_operand.vmem [shape: bf16[256,128], index: 5, kind: input, shape index: {}]
  %s6 = inlined_call_operand.vmem [shape: f32[1,128], index: 6, kind: input, shape index: {}]
  %s7 = inlined_call_operand.hbm [shape: f32[2,128], index: 7, kind: output, shape index: {}]
  %s8 = sld [smem:[#allocation0]]
  $region62: #{ac_forward.1} parent=0
    _
  %s10 = ssub.s32 1, %s8
  %s11 = scalar_select 0, %s10, %s8
  $region1: #{ac_forward.1} parent=0
    #allocation3 [shape = 'u8[131072]{0}', space=vmem, size = 0x20000, scoped, tag = 'input window, operand 0, single buffered']
    #allocation4 [shape = 's32[1]{0}', space=sflag, size = 0x4, scoped, tag = 'scoped memory for ac_forward.1']
    #allocation5 [shape = 's32[1]{0}', space=sflag, size = 0x4, scoped, tag = 'scoped memory for ac_forward.1']
    #allocation6 [shape = 'u8[2097152]{0}', space=vmem, size = 0x200000, scoped, tag = 'input window, operand 1, single buffered']
    #allocation7 [shape = 's32[1]{0}', space=sflag, size = 0x4, scoped, tag = 'scoped memory for ac_forward.1']
    #allocation8 [shape = 'u8[4096]{0}', space=vmem, size = 0x1000, scoped, tag = 'input window, operand 2, single buffered']
    #allocation9 [shape = 'u8[1024]{0}', space=vmem, size = 0x400, scoped, tag = 'input window, operand 4, single buffered']
    #allocation10 [shape = 's32[1]{0}', space=sflag, size = 0x4, scoped, tag = 'scoped memory for ac_forward.1']
    #allocation11 [shape = 'u8[4096]{0}', space=vmem, size = 0x1000, scoped, tag = 'output window, operand 0, single buffered']
    %12 = vsyncpa [#allocation4], 0
    %13 = vsyncpa [#allocation7], 0
    %14 = vsyncpa [#allocation10], 0
    %15 = vsyncpa [#allocation5], 0
    // Predicated region
    $region2: #{ac_forward.1} parent=1 // pred_check
      _
    $region3: #{ac_forward.1} parent=1 // pred_check_branch
      %17 = sbr.rel (0) target = $region5
    $region4: #{ac_forward.1} parent=1 // pred_region
      %19 = vsyncadd [#allocation4], 3072
      %s20 = sshll.u32 %s0, 4
      %s21 = int_to_ptr.hbm [resolvable:$true] %s20
      %s22 = sshll.u32 [#allocation3], 4
      %s23 = int_to_ptr.vmem [resolvable:$true] %s22
      %28 = dma.hbm_to_vmem [thread:$0]  %s21, 1024, %s23, [#allocation4], 512, 512, 32
    $region5: #{ac_forward.1} parent=1 // pred_fallthru
      _
    // Predicated region
    $region6: #{ac_forward.1} parent=1 // pred_check
      _
    $region7: #{ac_forward.1} parent=1 // pred_check_branch
      %30 = sbr.rel (0) target = $region9
    $region8: #{ac_forward.1} parent=1 // pred_region
      %32 = vsyncadd [#allocation7], 0
      %s33 = sshll.u32 %s1, 4
      %s34 = int_to_ptr.hbm [resolvable:$true] %s33
      %s35 = sshll.u32 [#allocation6], 4
      %s36 = int_to_ptr.vmem [resolvable:$true] %s35
      %41 = dma.hbm_to_vmem [thread:$0]  %s34, 65536, %s36, [#allocation7], 1024, 1024, 64
    $region9: #{ac_forward.1} parent=1 // pred_fallthru
      _
    // Predicated region
    $region10: #{ac_forward.1} parent=1 // pred_check
      _
    $region11: #{ac_forward.1} parent=1 // pred_check_branch
      %43 = sbr.rel (0) target = $region13
    $region12: #{ac_forward.1} parent=1 // pred_region
      %45 = vsyncadd [#allocation7], 0
      %s47 = sshll.u32 %s2, 4
      %s48 = int_to_ptr.hbm [resolvable:$true] %s47
      %s49 = sshll.u32 [#allocation8], 4
      %s50 = int_to_ptr.vmem [resolvable:$true] %s49
      %52 = dma.hbm_to_vmem [thread:$0]  %s48, 128, %s50, [#allocation7]
    $region13: #{ac_forward.1} parent=1 // pred_fallthru
      _
    // Predicated region
    $region14: #{ac_forward.1} parent=1 // pred_check
      _
    $region15: #{ac_forward.1} parent=1 // pred_check_branch
      %54 = sbr.rel (0) target = $region17
    $region16: #{ac_forward.1} parent=1 // pred_region
      _
    $region17: #{ac_forward.1} parent=1 // pred_fallthru
      _
    // Predicated region
    $region18: #{ac_forward.1} parent=1 // pred_check
      _
    $region19: #{ac_forward.1} parent=1 // pred_check_branch
      %56 = sbr.rel (0) target = $region21
    $region20: #{ac_forward.1} parent=1 // pred_region
      %58 = vsyncadd [#allocation10], 0
      %s60 = sshll.u32 %s4, 4
      %s61 = int_to_ptr.hbm [resolvable:$true] %s60
      %s62 = sshll.u32 [#allocation9], 4
      %s63 = int_to_ptr.vmem [resolvable:$true] %s62
      %65 = dma.hbm_to_vmem [thread:$0]  %s61, 32, %s63, [#allocation10]
    $region21: #{ac_forward.1} parent=1 // pred_fallthru
      _
    // Predicated region
    $region22: #{ac_forward.1} parent=1 // pred_check
      _
    $region23: #{ac_forward.1} parent=1 // pred_check_branch
      %67 = sbr.rel (0) target = $region25
    $region24: #{ac_forward.1} parent=1 // pred_region
      _
    $region25: #{ac_forward.1} parent=1 // pred_fallthru
      _
    // Predicated region
    $region26: #{ac_forward.1} parent=1 // pred_check
      _
    $region27: #{ac_forward.1} parent=1 // pred_check_branch
      %69 = sbr.rel (0) target = $region29
    $region28: #{ac_forward.1} parent=1 // pred_region
      _
    $region29: #{ac_forward.1} parent=1 // pred_fallthru
      _
    // Predicated region
    $region30: #{ac_forward.1} parent=1 // pred_check
      _
    $region31: #{ac_forward.1} parent=1 // pred_check_branch
      %71 = sbr.rel (0) target = $region33
    $region32: #{ac_forward.1} parent=1 // pred_region
      %73 = dma.done [#allocation4], 4096
    $region33: #{ac_forward.1} parent=1 // pred_fallthru
      _
    // Predicated region
    $region34: #{ac_forward.1} parent=1 // pred_check
      _
    $region35: #{ac_forward.1} parent=1 // pred_check_branch
      %75 = sbr.rel (0) target = $region37
    $region36: #{ac_forward.1} parent=1 // pred_region
      %77 = dma.done [#allocation7], 65536
    $region37: #{ac_forward.1} parent=1 // pred_fallthru
      _
    // Predicated region
    $region38: #{ac_forward.1} parent=1 // pred_check
      _
    $region39: #{ac_forward.1} parent=1 // pred_check_branch
      %79 = sbr.rel (0) target = $region41
    $region40: #{ac_forward.1} parent=1 // pred_region
      %81 = dma.done [#allocation7], 128
    $region41: #{ac_forward.1} parent=1 // pred_fallthru
      _
    // Predicated region
    $region42: #{ac_forward.1} parent=1 // pred_check
      _
    $region43: #{ac_forward.1} parent=1 // pred_check_branch
      %83 = sbr.rel (0) target = $region45
    $region44: #{ac_forward.1} parent=1 // pred_region
      %85 = dma.done [#allocation10], 32
    $region45: #{ac_forward.1} parent=1 // pred_fallthru
      _
    %p86 = scmp.eq.s32.totalorder 0, 0
    // Predicated region
    $region46: #{ac_forward.1} parent=1 // pred_check
      %p87 = pneg %p86
    $region47: #{ac_forward.1} parent=1 // pred_check_branch
      %89 = sbr.rel (%p87) target = $region49
    $region48: #{ac_forward.1} parent=1 // pred_region
      %90 = vst [vmem:[#allocation2] sm:$0xff] 0.0
      %91 = vst [vmem:[#allocation2 + $0x8] sm:$0xff] 0.0
      %92 = vst [vmem:[#allocation2 + $0x10] sm:$0xff] 0.0
      %93 = vst [vmem:[#allocation2 + $0x18] sm:$0xff] 0.0
    $region49: #{ac_forward.1} parent=1 // pred_fallthru
      _
    %v94 = vld [vmem:[#allocation3] sm:$0xff]
    %v95 = vld [vmem:[#allocation3 + $0x8] sm:$0xff]
    %v96 = vld [vmem:[#allocation3 + $0x10] sm:$0xff]
    %v97 = vld [vmem:[#allocation3 + $0x18] sm:$0xff]
    %v98 = vld [vmem:[#allocation3 + $0x20] sm:$0xff]
    %v99 = vld [vmem:[#allocation3 + $0x28] sm:$0xff]
    %v100 = vld [vmem:[#allocation3 + $0x30] sm:$0xff]
    %v101 = vld [vmem:[#allocation3 + $0x38] sm:$0xff]
    %v102 = vld [vmem:[#allocation3 + $0x40] sm:$0xff]
    %v103 = vld [vmem:[#allocation3 + $0x48] sm:$0xff]
    %v104 = vld [vmem:[#allocation3 + $0x50] sm:$0xff]
    %v105 = vld [vmem:[#allocation3 + $0x58] sm:$0xff]
    %v106 = vld [vmem:[#allocation3 + $0x60] sm:$0xff]
    %v107 = vld [vmem:[#allocation3 + $0x68] sm:$0xff]
    %v108 = vld [vmem:[#allocation3 + $0x70] sm:$0xff]
    %v109 = vld [vmem:[#allocation3 + $0x78] sm:$0xff]
    %v110 = vld [vmem:[#allocation3 + $0x80] sm:$0xff]
    %v111 = vld [vmem:[#allocation3 + $0x88] sm:$0xff]
    %v112 = vld [vmem:[#allocation3 + $0x90] sm:$0xff]
    %v113 = vld [vmem:[#allocation3 + $0x98] sm:$0xff]
    %v114 = vld [vmem:[#allocation3 + $0xa0] sm:$0xff]
    %v115 = vld [vmem:[#allocation3 + $0xa8] sm:$0xff]
    %v116 = vld [vmem:[#allocation3 + $0xb0] sm:$0xff]
    %v117 = vld [vmem:[#allocation3 + $0xb8] sm:$0xff]
    %v118 = vld [vmem:[#allocation3 + $0xc0] sm:$0xff]
    %v119 = vld [vmem:[#allocation3 + $0xc8] sm:$0xff]
    %v120 = vld [vmem:[#allocation3 + $0xd0] sm:$0xff]
    %v121 = vld [vmem:[#allocation3 + $0xd8] sm:$0xff]
    %v122 = vld [vmem:[#allocation3 + $0xe0] sm:$0xff]
    %v123 = vld [vmem:[#allocation3 + $0xe8] sm:$0xff]
    %v124 = vld [vmem:[#allocation3 + $0xf0] sm:$0xff]
    %v125 = vld [vmem:[#allocation3 + $0xf8] sm:$0xff]
    %v126 = vld [vmem:[#allocation2] sm:$0xff]
    %v127 = vld [vmem:[#allocation2 + $0x8] sm:$0xff]
    %v128 = vld [vmem:[#allocation2 + $0x10] sm:$0xff]
    %v129 = vld [vmem:[#allocation2 + $0x18] sm:$0xff]
    %v130 = vrot.slane %v94, 4
    %v131 = vadd.f32 %v94, %v130
    %v132 = vrot.slane %v131, 2
    %v133 = vadd.f32 %v131, %v132
    %v134 = vrot.slane %v133, 1
    %v135 = vadd.f32 %v133, %v134
    %v136 = vrot.slane %v95, 4
    %v137 = vadd.f32 %v95, %v136
    %v138 = vrot.slane %v137, 2
    %v139 = vadd.f32 %v137, %v138
    %v140 = vrot.slane %v139, 1
    %v141 = vadd.f32 %v139, %v140
    %v142 = vrot.slane %v96, 4
    %v143 = vadd.f32 %v96, %v142
    %v144 = vrot.slane %v143, 2
    %v145 = vadd.f32 %v143, %v144
    %v146 = vrot.slane %v145, 1
    %v147 = vadd.f32 %v145, %v146
    %v148 = vrot.slane %v97, 4
    %v149 = vadd.f32 %v97, %v148
    %v150 = vrot.slane %v149, 2
    %v151 = vadd.f32 %v149, %v150
    %v152 = vrot.slane %v151, 1
    %v153 = vadd.f32 %v151, %v152
    %v154 = vrot.slane %v98, 4
    %v155 = vadd.f32 %v98, %v154
    %v156 = vrot.slane %v155, 2
    %v157 = vadd.f32 %v155, %v156
    %v158 = vrot.slane %v157, 1
    %v159 = vadd.f32 %v157, %v158
    %v160 = vrot.slane %v99, 4
    %v161 = vadd.f32 %v99, %v160
    %v162 = vrot.slane %v161, 2
    %v163 = vadd.f32 %v161, %v162
    %v164 = vrot.slane %v163, 1
    %v165 = vadd.f32 %v163, %v164
    %v166 = vrot.slane %v100, 4
    %v167 = vadd.f32 %v100, %v166
    %v168 = vrot.slane %v167, 2
    %v169 = vadd.f32 %v167, %v168
    %v170 = vrot.slane %v169, 1
    %v171 = vadd.f32 %v169, %v170
    %v172 = vrot.slane %v101, 4
    %v173 = vadd.f32 %v101, %v172
    %v174 = vrot.slane %v173, 2
    %v175 = vadd.f32 %v173, %v174
    %v176 = vrot.slane %v175, 1
    %v177 = vadd.f32 %v175, %v176
    %v178 = vrot.slane %v102, 4
    %v179 = vadd.f32 %v102, %v178
    %v180 = vrot.slane %v179, 2
    %v181 = vadd.f32 %v179, %v180
    %v182 = vrot.slane %v181, 1
    %v183 = vadd.f32 %v181, %v182
    %v184 = vrot.slane %v103, 4
    %v185 = vadd.f32 %v103, %v184
    %v186 = vrot.slane %v185, 2
    %v187 = vadd.f32 %v185, %v186
    %v188 = vrot.slane %v187, 1
    %v189 = vadd.f32 %v187, %v188
    %v190 = vrot.slane %v104, 4
    %v191 = vadd.f32 %v104, %v190
    %v192 = vrot.slane %v191, 2
    %v193 = vadd.f32 %v191, %v192
    %v194 = vrot.slane %v193, 1
    %v195 = vadd.f32 %v193, %v194
    %v196 = vrot.slane %v105, 4
    %v197 = vadd.f32 %v105, %v196
    %v198 = vrot.slane %v197, 2
    %v199 = vadd.f32 %v197, %v198
    %v200 = vrot.slane %v199, 1
    %v201 = vadd.f32 %v199, %v200
    %v202 = vrot.slane %v106, 4
    %v203 = vadd.f32 %v106, %v202
    %v204 = vrot.slane %v203, 2
    %v205 = vadd.f32 %v203, %v204
    %v206 = vrot.slane %v205, 1
    %v207 = vadd.f32 %v205, %v206
    %v208 = vrot.slane %v107, 4
    %v209 = vadd.f32 %v107, %v208
    %v210 = vrot.slane %v209, 2
    %v211 = vadd.f32 %v209, %v210
    %v212 = vrot.slane %v211, 1
    %v213 = vadd.f32 %v211, %v212
    %v214 = vrot.slane %v108, 4
    %v215 = vadd.f32 %v108, %v214
    %v216 = vrot.slane %v215, 2
    %v217 = vadd.f32 %v215, %v216
    %v218 = vrot.slane %v217, 1
    %v219 = vadd.f32 %v217, %v218
    %v220 = vrot.slane %v109, 4
    %v221 = vadd.f32 %v109, %v220
    %v222 = vrot.slane %v221, 2
    %v223 = vadd.f32 %v221, %v222
    %v224 = vrot.slane %v223, 1
    %v225 = vadd.f32 %v223, %v224
    %v226 = vrot.slane %v110, 4
    %v227 = vadd.f32 %v110, %v226
    %v228 = vrot.slane %v227, 2
    %v229 = vadd.f32 %v227, %v228
    %v230 = vrot.slane %v229, 1
    %v231 = vadd.f32 %v229, %v230
    %v232 = vrot.slane %v111, 4
    %v233 = vadd.f32 %v111, %v232
    %v234 = vrot.slane %v233, 2
    %v235 = vadd.f32 %v233, %v234
    %v236 = vrot.slane %v235, 1
    %v237 = vadd.f32 %v235, %v236
    %v238 = vrot.slane %v112, 4
    %v239 = vadd.f32 %v112, %v238
    %v240 = vrot.slane %v239, 2
    %v241 = vadd.f32 %v239, %v240
    %v242 = vrot.slane %v241, 1
    %v243 = vadd.f32 %v241, %v242
    %v244 = vrot.slane %v113, 4
    %v245 = vadd.f32 %v113, %v244
    %v246 = vrot.slane %v245, 2
    %v247 = vadd.f32 %v245, %v246
    %v248 = vrot.slane %v247, 1
    %v249 = vadd.f32 %v247, %v248
    %v250 = vrot.slane %v114, 4
    %v251 = vadd.f32 %v114, %v250
    %v252 = vrot.slane %v251, 2
    %v253 = vadd.f32 %v251, %v252
    %v254 = vrot.slane %v253, 1
    %v255 = vadd.f32 %v253, %v254
    %v256 = vrot.slane %v115, 4
    %v257 = vadd.f32 %v115, %v256
    %v258 = vrot.slane %v257, 2
    %v259 = vadd.f32 %v257, %v258
    %v260 = vrot.slane %v259, 1
    %v261 = vadd.f32 %v259, %v260
    %v262 = vrot.slane %v116, 4
    %v263 = vadd.f32 %v116, %v262
    %v264 = vrot.slane %v263, 2
    %v265 = vadd.f32 %v263, %v264
    %v266 = vrot.slane %v265, 1
    %v267 = vadd.f32 %v265, %v266
    %v268 = vrot.slane %v117, 4
    %v269 = vadd.f32 %v117, %v268
    %v270 = vrot.slane %v269, 2
    %v271 = vadd.f32 %v269, %v270
    %v272 = vrot.slane %v271, 1
    %v273 = vadd.f32 %v271, %v272
    %v274 = vrot.slane %v118, 4
    %v275 = vadd.f32 %v118, %v274
    %v276 = vrot.slane %v275, 2
    %v277 = vadd.f32 %v275, %v276
    %v278 = vrot.slane %v277, 1
    %v279 = vadd.f32 %v277, %v278
    %v280 = vrot.slane %v119, 4
    %v281 = vadd.f32 %v119, %v280
    %v282 = vrot.slane %v281, 2
    %v283 = vadd.f32 %v281, %v282
    %v284 = vrot.slane %v283, 1
    %v285 = vadd.f32 %v283, %v284
    %v286 = vrot.slane %v120, 4
    %v287 = vadd.f32 %v120, %v286
    %v288 = vrot.slane %v287, 2
    %v289 = vadd.f32 %v287, %v288
    %v290 = vrot.slane %v289, 1
    %v291 = vadd.f32 %v289, %v290
    %v292 = vrot.slane %v121, 4
    %v293 = vadd.f32 %v121, %v292
    %v294 = vrot.slane %v293, 2
    %v295 = vadd.f32 %v293, %v294
    %v296 = vrot.slane %v295, 1
    %v297 = vadd.f32 %v295, %v296
    %v298 = vrot.slane %v122, 4
    %v299 = vadd.f32 %v122, %v298
    %v300 = vrot.slane %v299, 2
    %v301 = vadd.f32 %v299, %v300
    %v302 = vrot.slane %v301, 1
    %v303 = vadd.f32 %v301, %v302
    %v304 = vrot.slane %v123, 4
    %v305 = vadd.f32 %v123, %v304
    %v306 = vrot.slane %v305, 2
    %v307 = vadd.f32 %v305, %v306
    %v308 = vrot.slane %v307, 1
    %v309 = vadd.f32 %v307, %v308
    %v310 = vrot.slane %v124, 4
    %v311 = vadd.f32 %v124, %v310
    %v312 = vrot.slane %v311, 2
    %v313 = vadd.f32 %v311, %v312
    %v314 = vrot.slane %v313, 1
    %v315 = vadd.f32 %v313, %v314
    %v316 = vrot.slane %v125, 4
    %v317 = vadd.f32 %v125, %v316
    %v318 = vrot.slane %v317, 2
    %v319 = vadd.f32 %v317, %v318
    %v320 = vrot.slane %v319, 1
    %v321 = vadd.f32 %v319, %v320
    %vm354 = vcmask 1041409
    %v355 = vsel %vm354, %v159, %v135
    %vm356 = vcmask 1042434
    %v357 = vsel %vm356, %v183, %v355
    %vm358 = vcmask 1043459
    %v359 = vsel %vm358, %v207, %v357
    %vm360 = vcmask 1044484
    %v361 = vsel %vm360, %v231, %v359
    %vm362 = vcmask 1045509
    %v363 = vsel %vm362, %v255, %v361
    %vm364 = vcmask 1046534
    %v365 = vsel %vm364, %v279, %v363
    %vm366 = vcmask 1047559
    %v367 = vsel %vm366, %v303, %v365
    %v368 = vsel %vm354, %v165, %v141
    %v369 = vsel %vm356, %v189, %v368
    %v370 = vsel %vm358, %v213, %v369
    %v371 = vsel %vm360, %v237, %v370
    %v372 = vsel %vm362, %v261, %v371
    %v373 = vsel %vm364, %v285, %v372
    %v374 = vsel %vm366, %v309, %v373
    %v375 = vsel %vm354, %v171, %v147
    %v376 = vsel %vm356, %v195, %v375
    %v377 = vsel %vm358, %v219, %v376
    %v378 = vsel %vm360, %v243, %v377
    %v379 = vsel %vm362, %v267, %v378
    %v380 = vsel %vm364, %v291, %v379
    %v381 = vsel %vm366, %v315, %v380
    %v382 = vsel %vm354, %v177, %v153
    %v383 = vsel %vm356, %v201, %v382
    %v384 = vsel %vm358, %v225, %v383
    %v385 = vsel %vm360, %v249, %v384
    %v386 = vsel %vm362, %v273, %v385
    %v387 = vsel %vm364, %v297, %v386
    %v388 = vsel %vm366, %v321, %v387
    %v393 = vadd.f32 %v126, %v367
    %v394 = vadd.f32 %v127, %v374
    %v395 = vadd.f32 %v128, %v381
    %v396 = vadd.f32 %v129, %v388
    %397 = vst [vmem:[#allocation2] sm:$0xff] %v393
    %398 = vst [vmem:[#allocation2 + $0x8] sm:$0xff] %v394
    %399 = vst [vmem:[#allocation2 + $0x10] sm:$0xff] %v395
    %400 = vst [vmem:[#allocation2 + $0x18] sm:$0xff] %v396
    // Predicated region
    $region50: #{ac_forward.1} parent=1 // pred_check
      %p401 = pneg %p86
    $region51: #{ac_forward.1} parent=1 // pred_check_branch
      %403 = sbr.rel (%p401) target = $region53
    $region52: #{ac_forward.1} parent=1 // pred_region
      %v404 = vld [vmem:[#allocation2] sm:$0xff]
      %v405 = vld [vmem:[#allocation2 + $0x8] sm:$0xff]
      %v406 = vld [vmem:[#allocation2 + $0x10] sm:$0xff]
      %v407 = vld [vmem:[#allocation2 + $0x18] sm:$0xff]
      %v408 = vmul.f32 %v404, 0.125
      %v409 = vmul.f32 %v405, 0.125
      %v410 = vmul.f32 %v406, 0.125
      %v411 = vmul.f32 %v407, 0.125
      %v412 = vld [vmem:[#allocation6] sm:$0xff]
      %v413 = vld [vmem:[#allocation6 + $0x8] sm:$0xff]
      %v414 = vld [vmem:[#allocation6 + $0x10] sm:$0xff]
      %v415 = vld [vmem:[#allocation6 + $0x18] sm:$0xff]
      %v416 = vld [vmem:[#allocation6 + $0x20] sm:$0xff]
      %v417 = vld [vmem:[#allocation6 + $0x28] sm:$0xff]
      %v418 = vld [vmem:[#allocation6 + $0x30] sm:$0xff]
      %v419 = vld [vmem:[#allocation6 + $0x38] sm:$0xff]
      %v420 = vld [vmem:[#allocation6 + $0x40] sm:$0xff]
      %v421 = vld [vmem:[#allocation6 + $0x48] sm:$0xff]
      %v422 = vld [vmem:[#allocation6 + $0x50] sm:$0xff]
      %v423 = vld [vmem:[#allocation6 + $0x58] sm:$0xff]
      %v424 = vld [vmem:[#allocation6 + $0x60] sm:$0xff]
      %v425 = vld [vmem:[#allocation6 + $0x68] sm:$0xff]
      %v426 = vld [vmem:[#allocation6 + $0x70] sm:$0xff]
      %v427 = vld [vmem:[#allocation6 + $0x78] sm:$0xff]
      %v428 = vld [vmem:[#allocation6 + $0x80] sm:$0xff]
      %v429 = vld [vmem:[#allocation6 + $0x88] sm:$0xff]
      %v430 = vld [vmem:[#allocation6 + $0x90] sm:$0xff]
      %v431 = vld [vmem:[#allocation6 + $0x98] sm:$0xff]
      %v432 = vld [vmem:[#allocation6 + $0xa0] sm:$0xff]
      %v433 = vld [vmem:[#allocation6 + $0xa8] sm:$0xff]
      %v434 = vld [vmem:[#allocation6 + $0xb0] sm:$0xff]
      %v435 = vld [vmem:[#allocation6 + $0xb8] sm:$0xff]
      %v436 = vld [vmem:[#allocation6 + $0xc0] sm:$0xff]
      %v437 = vld [vmem:[#allocation6 + $0xc8] sm:$0xff]
      %v438 = vld [vmem:[#allocation6 + $0xd0] sm:$0xff]
      %v439 = vld [vmem:[#allocation6 + $0xd8] sm:$0xff]
      %v440 = vld [vmem:[#allocation6 + $0xe0] sm:$0xff]
      %v441 = vld [vmem:[#allocation6 + $0xe8] sm:$0xff]
      %v442 = vld [vmem:[#allocation6 + $0xf0] sm:$0xff]
      %v443 = vld [vmem:[#allocation6 + $0xf8] sm:$0xff]
      %v444 = vld [vmem:[#allocation6 + $0x100] sm:$0xff]
      %v445 = vld [vmem:[#allocation6 + $0x108] sm:$0xff]
      %v446 = vld [vmem:[#allocation6 + $0x110] sm:$0xff]
      %v447 = vld [vmem:[#allocation6 + $0x118] sm:$0xff]
      %v448 = vld [vmem:[#allocation6 + $0x120] sm:$0xff]
      %v449 = vld [vmem:[#allocation6 + $0x128] sm:$0xff]
      %v450 = vld [vmem:[#allocation6 + $0x130] sm:$0xff]
      %v451 = vld [vmem:[#allocation6 + $0x138] sm:$0xff]
      %v452 = vld [vmem:[#allocation6 + $0x140] sm:$0xff]
      %v453 = vld [vmem:[#allocation6 + $0x148] sm:$0xff]
      %v454 = vld [vmem:[#allocation6 + $0x150] sm:$0xff]
      %v455 = vld [vmem:[#allocation6 + $0x158] sm:$0xff]
      %v456 = vld [vmem:[#allocation6 + $0x160] sm:$0xff]
      %v457 = vld [vmem:[#allocation6 + $0x168] sm:$0xff]
      %v458 = vld [vmem:[#allocation6 + $0x170] sm:$0xff]
      %v459 = vld [vmem:[#allocation6 + $0x178] sm:$0xff]
      %v460 = vld [vmem:[#allocation6 + $0x180] sm:$0xff]
      %v461 = vld [vmem:[#allocation6 + $0x188] sm:$0xff]
      %v462 = vld [vmem:[#allocation6 + $0x190] sm:$0xff]
      %v463 = vld [vmem:[#allocation6 + $0x198] sm:$0xff]
      %v464 = vld [vmem:[#allocation6 + $0x1a0] sm:$0xff]
      %v465 = vld [vmem:[#allocation6 + $0x1a8] sm:$0xff]
      %v466 = vld [vmem:[#allocation6 + $0x1b0] sm:$0xff]
      %v467 = vld [vmem:[#allocation6 + $0x1b8] sm:$0xff]
      %v468 = vld [vmem:[#allocation6 + $0x1c0] sm:$0xff]
      %v469 = vld [vmem:[#allocation6 + $0x1c8] sm:$0xff]
      %v470 = vld [vmem:[#allocation6 + $0x1d0] sm:$0xff]
      %v471 = vld [vmem:[#allocation6 + $0x1d8] sm:$0xff]
      %v472 = vld [vmem:[#allocation6 + $0x1e0] sm:$0xff]
      %v473 = vld [vmem:[#allocation6 + $0x1e8] sm:$0xff]
      %v474 = vld [vmem:[#allocation6 + $0x1f0] sm:$0xff]
      %v475 = vld [vmem:[#allocation6 + $0x1f8] sm:$0xff]
      %v476 = vld [vmem:[#allocation6 + $0x200] sm:$0xff]
      %v477 = vld [vmem:[#allocation6 + $0x208] sm:$0xff]
      %v478 = vld [vmem:[#allocation6 + $0x210] sm:$0xff]
      %v479 = vld [vmem:[#allocation6 + $0x218] sm:$0xff]
      %v480 = vld [vmem:[#allocation6 + $0x220] sm:$0xff]
      %v481 = vld [vmem:[#allocation6 + $0x228] sm:$0xff]
      %v482 = vld [vmem:[#allocation6 + $0x230] sm:$0xff]
      %v483 = vld [vmem:[#allocation6 + $0x238] sm:$0xff]
      %v484 = vld [vmem:[#allocation6 + $0x240] sm:$0xff]
      %v485 = vld [vmem:[#allocation6 + $0x248] sm:$0xff]
      %v486 = vld [vmem:[#allocation6 + $0x250] sm:$0xff]
      %v487 = vld [vmem:[#allocation6 + $0x258] sm:$0xff]
      %v488 = vld [vmem:[#allocation6 + $0x260] sm:$0xff]
      %v489 = vld [vmem:[#allocation6 + $0x268] sm:$0xff]
      %v490 = vld [vmem:[#allocation6 + $0x270] sm:$0xff]
      %v491 = vld [vmem:[#allocation6 + $0x278] sm:$0xff]
      %v492 = vld [vmem:[#allocation6 + $0x280] sm:$0xff]
      %v493 = vld [vmem:[#allocation6 + $0x288] sm:$0xff]
      %v494 = vld [vmem:[#allocation6 + $0x290] sm:$0xff]
      %v495 = vld [vmem:[#allocation6 + $0x298] sm:$0xff]
      %v496 = vld [vmem:[#allocation6 + $0x2a0] sm:$0xff]
      %v497 = vld [vmem:[#allocation6 + $0x2a8] sm:$0xff]
      %v498 = vld [vmem:[#allocation6 + $0x2b0] sm:$0xff]
      %v499 = vld [vmem:[#allocation6 + $0x2b8] sm:$0xff]
      %v500 = vld [vmem:[#allocation6 + $0x2c0] sm:$0xff]
      %v501 = vld [vmem:[#allocation6 + $0x2c8] sm:$0xff]
      %v502 = vld [vmem:[#allocation6 + $0x2d0] sm:$0xff]
      %v503 = vld [vmem:[#allocation6 + $0x2d8] sm:$0xff]
      %v504 = vld [vmem:[#allocation6 + $0x2e0] sm:$0xff]
      %v505 = vld [vmem:[#allocation6 + $0x2e8] sm:$0xff]
      %v506 = vld [vmem:[#allocation6 + $0x2f0] sm:$0xff]
      %v507 = vld [vmem:[#allocation6 + $0x2f8] sm:$0xff]
      %v508 = vld [vmem:[#allocation6 + $0x300] sm:$0xff]
      %v509 = vld [vmem:[#allocation6 + $0x308] sm:$0xff]
      %v510 = vld [vmem:[#allocation6 + $0x310] sm:$0xff]
      %v511 = vld [vmem:[#allocation6 + $0x318] sm:$0xff]
      %v512 = vld [vmem:[#allocation6 + $0x320] sm:$0xff]
      %v513 = vld [vmem:[#allocation6 + $0x328] sm:$0xff]
      %v514 = vld [vmem:[#allocation6 + $0x330] sm:$0xff]
      %v515 = vld [vmem:[#allocation6 + $0x338] sm:$0xff]
      %v516 = vld [vmem:[#allocation6 + $0x340] sm:$0xff]
      %v517 = vld [vmem:[#allocation6 + $0x348] sm:$0xff]
      %v518 = vld [vmem:[#allocation6 + $0x350] sm:$0xff]
      %v519 = vld [vmem:[#allocation6 + $0x358] sm:$0xff]
      %v520 = vld [vmem:[#allocation6 + $0x360] sm:$0xff]
      %v521 = vld [vmem:[#allocation6 + $0x368] sm:$0xff]
      %v522 = vld [vmem:[#allocation6 + $0x370] sm:$0xff]
      %v523 = vld [vmem:[#allocation6 + $0x378] sm:$0xff]
      %v524 = vld [vmem:[#allocation6 + $0x380] sm:$0xff]
      %v525 = vld [vmem:[#allocation6 + $0x388] sm:$0xff]
      %v526 = vld [vmem:[#allocation6 + $0x390] sm:$0xff]
      %v527 = vld [vmem:[#allocation6 + $0x398] sm:$0xff]
      %v528 = vld [vmem:[#allocation6 + $0x3a0] sm:$0xff]
      %v529 = vld [vmem:[#allocation6 + $0x3a8] sm:$0xff]
      %v530 = vld [vmem:[#allocation6 + $0x3b0] sm:$0xff]
      %v531 = vld [vmem:[#allocation6 + $0x3b8] sm:$0xff]
      %v532 = vld [vmem:[#allocation6 + $0x3c0] sm:$0xff]
      %v533 = vld [vmem:[#allocation6 + $0x3c8] sm:$0xff]
      %v534 = vld [vmem:[#allocation6 + $0x3d0] sm:$0xff]
      %v535 = vld [vmem:[#allocation6 + $0x3d8] sm:$0xff]
      %v536 = vld [vmem:[#allocation6 + $0x3e0] sm:$0xff]
      %v537 = vld [vmem:[#allocation6 + $0x3e8] sm:$0xff]
      %v538 = vld [vmem:[#allocation6 + $0x3f0] sm:$0xff]
      %v539 = vld [vmem:[#allocation6 + $0x3f8] sm:$0xff]
      %v540 = vld [vmem:[#allocation6 + $0x400] sm:$0xff]
      %v541 = vld [vmem:[#allocation6 + $0x408] sm:$0xff]
      %v542 = vld [vmem:[#allocation6 + $0x410] sm:$0xff]
      %v543 = vld [vmem:[#allocation6 + $0x418] sm:$0xff]
      %v544 = vld [vmem:[#allocation6 + $0x420] sm:$0xff]
      %v545 = vld [vmem:[#allocation6 + $0x428] sm:$0xff]
      %v546 = vld [vmem:[#allocation6 + $0x430] sm:$0xff]
      %v547 = vld [vmem:[#allocation6 + $0x438] sm:$0xff]
      %v548 = vld [vmem:[#allocation6 + $0x440] sm:$0xff]
      %v549 = vld [vmem:[#allocation6 + $0x448] sm:$0xff]
      %v550 = vld [vmem:[#allocation6 + $0x450] sm:$0xff]
      %v551 = vld [vmem:[#allocation6 + $0x458] sm:$0xff]
      %v552 = vld [vmem:[#allocation6 + $0x460] sm:$0xff]
      %v553 = vld [vmem:[#allocation6 + $0x468] sm:$0xff]
      %v554 = vld [vmem:[#allocation6 + $0x470] sm:$0xff]
      %v555 = vld [vmem:[#allocation6 + $0x478] sm:$0xff]
      %v556 = vld [vmem:[#allocation6 + $0x480] sm:$0xff]
      %v557 = vld [vmem:[#allocation6 + $0x488] sm:$0xff]
      %v558 = vld [vmem:[#allocation6 + $0x490] sm:$0xff]
      %v559 = vld [vmem:[#allocation6 + $0x498] sm:$0xff]
      %v560 = vld [vmem:[#allocation6 + $0x4a0] sm:$0xff]
      %v561 = vld [vmem:[#allocation6 + $0x4a8] sm:$0xff]
      %v562 = vld [vmem:[#allocation6 + $0x4b0] sm:$0xff]
      %v563 = vld [vmem:[#allocation6 + $0x4b8] sm:$0xff]
      %v564 = vld [vmem:[#allocation6 + $0x4c0] sm:$0xff]
      %v565 = vld [vmem:[#allocation6 + $0x4c8] sm:$0xff]
      %v566 = vld [vmem:[#allocation6 + $0x4d0] sm:$0xff]
      %v567 = vld [vmem:[#allocation6 + $0x4d8] sm:$0xff]
      %v568 = vld [vmem:[#allocation6 + $0x4e0] sm:$0xff]
      %v569 = vld [vmem:[#allocation6 + $0x4e8] sm:$0xff]
      %v570 = vld [vmem:[#allocation6 + $0x4f0] sm:$0xff]
      %v571 = vld [vmem:[#allocation6 + $0x4f8] sm:$0xff]
      %v572 = vld [vmem:[#allocation6 + $0x500] sm:$0xff]
      %v573 = vld [vmem:[#allocation6 + $0x508] sm:$0xff]
      %v574 = vld [vmem:[#allocation6 + $0x510] sm:$0xff]
      %v575 = vld [vmem:[#allocation6 + $0x518] sm:$0xff]
      %v576 = vld [vmem:[#allocation6 + $0x520] sm:$0xff]
      %v577 = vld [vmem:[#allocation6 + $0x528] sm:$0xff]
      %v578 = vld [vmem:[#allocation6 + $0x530] sm:$0xff]
      %v579 = vld [vmem:[#allocation6 + $0x538] sm:$0xff]
      %v580 = vld [vmem:[#allocation6 + $0x540] sm:$0xff]
      %v581 = vld [vmem:[#allocation6 + $0x548] sm:$0xff]
      %v582 = vld [vmem:[#allocation6 + $0x550] sm:$0xff]
      %v583 = vld [vmem:[#allocation6 + $0x558] sm:$0xff]
      %v584 = vld [vmem:[#allocation6 + $0x560] sm:$0xff]
      %v585 = vld [vmem:[#allocation6 + $0x568] sm:$0xff]
      %v586 = vld [vmem:[#allocation6 + $0x570] sm:$0xff]
      %v587 = vld [vmem:[#allocation6 + $0x578] sm:$0xff]
      %v588 = vld [vmem:[#allocation6 + $0x580] sm:$0xff]
      %v589 = vld [vmem:[#allocation6 + $0x588] sm:$0xff]
      %v590 = vld [vmem:[#allocation6 + $0x590] sm:$0xff]
      %v591 = vld [vmem:[#allocation6 + $0x598] sm:$0xff]
      %v592 = vld [vmem:[#allocation6 + $0x5a0] sm:$0xff]
      %v593 = vld [vmem:[#allocation6 + $0x5a8] sm:$0xff]
      %v594 = vld [vmem:[#allocation6 + $0x5b0] sm:$0xff]
      %v595 = vld [vmem:[#allocation6 + $0x5b8] sm:$0xff]
      %v596 = vld [vmem:[#allocation6 + $0x5c0] sm:$0xff]
      %v597 = vld [vmem:[#allocation6 + $0x5c8] sm:$0xff]
      %v598 = vld [vmem:[#allocation6 + $0x5d0] sm:$0xff]
      %v599 = vld [vmem:[#allocation6 + $0x5d8] sm:$0xff]
      %v600 = vld [vmem:[#allocation6 + $0x5e0] sm:$0xff]
      %v601 = vld [vmem:[#allocation6 + $0x5e8] sm:$0xff]
      %v602 = vld [vmem:[#allocation6 + $0x5f0] sm:$0xff]
      %v603 = vld [vmem:[#allocation6 + $0x5f8] sm:$0xff]
      %v604 = vld [vmem:[#allocation6 + $0x600] sm:$0xff]
      %v605 = vld [vmem:[#allocation6 + $0x608] sm:$0xff]
      %v606 = vld [vmem:[#allocation6 + $0x610] sm:$0xff]
      %v607 = vld [vmem:[#allocation6 + $0x618] sm:$0xff]
      %v608 = vld [vmem:[#allocation6 + $0x620] sm:$0xff]
      %v609 = vld [vmem:[#allocation6 + $0x628] sm:$0xff]
      %v610 = vld [vmem:[#allocation6 + $0x630] sm:$0xff]
      %v611 = vld [vmem:[#allocation6 + $0x638] sm:$0xff]
      %v612 = vld [vmem:[#allocation6 + $0x640] sm:$0xff]
      %v613 = vld [vmem:[#allocation6 + $0x648] sm:$0xff]
      %v614 = vld [vmem:[#allocation6 + $0x650] sm:$0xff]
      %v615 = vld [vmem:[#allocation6 + $0x658] sm:$0xff]
      %v616 = vld [vmem:[#allocation6 + $0x660] sm:$0xff]
      %v617 = vld [vmem:[#allocation6 + $0x668] sm:$0xff]
      %v618 = vld [vmem:[#allocation6 + $0x670] sm:$0xff]
      %v619 = vld [vmem:[#allocation6 + $0x678] sm:$0xff]
      %v620 = vld [vmem:[#allocation6 + $0x680] sm:$0xff]
      %v621 = vld [vmem:[#allocation6 + $0x688] sm:$0xff]
      %v622 = vld [vmem:[#allocation6 + $0x690] sm:$0xff]
      %v623 = vld [vmem:[#allocation6 + $0x698] sm:$0xff]
      %v624 = vld [vmem:[#allocation6 + $0x6a0] sm:$0xff]
      %v625 = vld [vmem:[#allocation6 + $0x6a8] sm:$0xff]
      %v626 = vld [vmem:[#allocation6 + $0x6b0] sm:$0xff]
      %v627 = vld [vmem:[#allocation6 + $0x6b8] sm:$0xff]
      %v628 = vld [vmem:[#allocation6 + $0x6c0] sm:$0xff]
      %v629 = vld [vmem:[#allocation6 + $0x6c8] sm:$0xff]
      %v630 = vld [vmem:[#allocation6 + $0x6d0] sm:$0xff]
      %v631 = vld [vmem:[#allocation6 + $0x6d8] sm:$0xff]
      %v632 = vld [vmem:[#allocation6 + $0x6e0] sm:$0xff]
      %v633 = vld [vmem:[#allocation6 + $0x6e8] sm:$0xff]
      %v634 = vld [vmem:[#allocation6 + $0x6f0] sm:$0xff]
      %v635 = vld [vmem:[#allocation6 + $0x6f8] sm:$0xff]
      %v636 = vld [vmem:[#allocation6 + $0x700] sm:$0xff]
      %v637 = vld [vmem:[#allocation6 + $0x708] sm:$0xff]
      %v638 = vld [vmem:[#allocation6 + $0x710] sm:$0xff]
      %v639 = vld [vmem:[#allocation6 + $0x718] sm:$0xff]
      %v640 = vld [vmem:[#allocation6 + $0x720] sm:$0xff]
      %v641 = vld [vmem:[#allocation6 + $0x728] sm:$0xff]
      %v642 = vld [vmem:[#allocation6 + $0x730] sm:$0xff]
      %v643 = vld [vmem:[#allocation6 + $0x738] sm:$0xff]
      %v644 = vld [vmem:[#allocation6 + $0x740] sm:$0xff]
      %v645 = vld [vmem:[#allocation6 + $0x748] sm:$0xff]
      %v646 = vld [vmem:[#allocation6 + $0x750] sm:$0xff]
      %v647 = vld [vmem:[#allocation6 + $0x758] sm:$0xff]
      %v648 = vld [vmem:[#allocation6 + $0x760] sm:$0xff]
      %v649 = vld [vmem:[#allocation6 + $0x768] sm:$0xff]
      %v650 = vld [vmem:[#allocation6 + $0x770] sm:$0xff]
      %v651 = vld [vmem:[#allocation6 + $0x778] sm:$0xff]
      %v652 = vld [vmem:[#allocation6 + $0x780] sm:$0xff]
      %v653 = vld [vmem:[#allocation6 + $0x788] sm:$0xff]
      %v654 = vld [vmem:[#allocation6 + $0x790] sm:$0xff]
      %v655 = vld [vmem:[#allocation6 + $0x798] sm:$0xff]
      %v656 = vld [vmem:[#allocation6 + $0x7a0] sm:$0xff]
      %v657 = vld [vmem:[#allocation6 + $0x7a8] sm:$0xff]
      %v658 = vld [vmem:[#allocation6 + $0x7b0] sm:$0xff]
      %v659 = vld [vmem:[#allocation6 + $0x7b8] sm:$0xff]
      %v660 = vld [vmem:[#allocation6 + $0x7c0] sm:$0xff]
      %v661 = vld [vmem:[#allocation6 + $0x7c8] sm:$0xff]
      %v662 = vld [vmem:[#allocation6 + $0x7d0] sm:$0xff]
      %v663 = vld [vmem:[#allocation6 + $0x7d8] sm:$0xff]
      %v664 = vld [vmem:[#allocation6 + $0x7e0] sm:$0xff]
      %v665 = vld [vmem:[#allocation6 + $0x7e8] sm:$0xff]
      %v666 = vld [vmem:[#allocation6 + $0x7f0] sm:$0xff]
      %v667 = vld [vmem:[#allocation6 + $0x7f8] sm:$0xff]
      %v668 = vld [vmem:[#allocation6 + $0x800] sm:$0xff]
      %v669 = vld [vmem:[#allocation6 + $0x808] sm:$0xff]
      %v670 = vld [vmem:[#allocation6 + $0x810] sm:$0xff]
      %v671 = vld [vmem:[#allocation6 + $0x818] sm:$0xff]
      %v672 = vld [vmem:[#allocation6 + $0x820] sm:$0xff]
      %v673 = vld [vmem:[#allocation6 + $0x828] sm:$0xff]
      %v674 = vld [vmem:[#allocation6 + $0x830] sm:$0xff]
      %v675 = vld [vmem:[#allocation6 + $0x838] sm:$0xff]
      %v676 = vld [vmem:[#allocation6 + $0x840] sm:$0xff]
      %v677 = vld [vmem:[#allocation6 + $0x848] sm:$0xff]
      %v678 = vld [vmem:[#allocation6 + $0x850] sm:$0xff]
      %v679 = vld [vmem:[#allocation6 + $0x858] sm:$0xff]
      %v680 = vld [vmem:[#allocation6 + $0x860] sm:$0xff]
      %v681 = vld [vmem:[#allocation6 + $0x868] sm:$0xff]
      %v682 = vld [vmem:[#allocation6 + $0x870] sm:$0xff]
      %v683 = vld [vmem:[#allocation6 + $0x878] sm:$0xff]
      %v684 = vld [vmem:[#allocation6 + $0x880] sm:$0xff]
      %v685 = vld [vmem:[#allocation6 + $0x888] sm:$0xff]
      %v686 = vld [vmem:[#allocation6 + $0x890] sm:$0xff]
      %v687 = vld [vmem:[#allocation6 + $0x898] sm:$0xff]
      %v688 = vld [vmem:[#allocation6 + $0x8a0] sm:$0xff]
      %v689 = vld [vmem:[#allocation6 + $0x8a8] sm:$0xff]
      %v690 = vld [vmem:[#allocation6 + $0x8b0] sm:$0xff]
      %v691 = vld [vmem:[#allocation6 + $0x8b8] sm:$0xff]
      %v692 = vld [vmem:[#allocation6 + $0x8c0] sm:$0xff]
      %v693 = vld [vmem:[#allocation6 + $0x8c8] sm:$0xff]
      %v694 = vld [vmem:[#allocation6 + $0x8d0] sm:$0xff]
      %v695 = vld [vmem:[#allocation6 + $0x8d8] sm:$0xff]
      %v696 = vld [vmem:[#allocation6 + $0x8e0] sm:$0xff]
      %v697 = vld [vmem:[#allocation6 + $0x8e8] sm:$0xff]
      %v698 = vld [vmem:[#allocation6 + $0x8f0] sm:$0xff]
      %v699 = vld [vmem:[#allocation6 + $0x8f8] sm:$0xff]
      %v700 = vld [vmem:[#allocation6 + $0x900] sm:$0xff]
      %v701 = vld [vmem:[#allocation6 + $0x908] sm:$0xff]
      %v702 = vld [vmem:[#allocation6 + $0x910] sm:$0xff]
      %v703 = vld [vmem:[#allocation6 + $0x918] sm:$0xff]
      %v704 = vld [vmem:[#allocation6 + $0x920] sm:$0xff]
      %v705 = vld [vmem:[#allocation6 + $0x928] sm:$0xff]
      %v706 = vld [vmem:[#allocation6 + $0x930] sm:$0xff]
      %v707 = vld [vmem:[#allocation6 + $0x938] sm:$0xff]
      %v708 = vld [vmem:[#allocation6 + $0x940] sm:$0xff]
      %v709 = vld [vmem:[#allocation6 + $0x948] sm:$0xff]
      %v710 = vld [vmem:[#allocation6 + $0x950] sm:$0xff]
      %v711 = vld [vmem:[#allocation6 + $0x958] sm:$0xff]
      %v712 = vld [vmem:[#allocation6 + $0x960] sm:$0xff]
      %v713 = vld [vmem:[#allocation6 + $0x968] sm:$0xff]
      %v714 = vld [vmem:[#allocation6 + $0x970] sm:$0xff]
      %v715 = vld [vmem:[#allocation6 + $0x978] sm:$0xff]
      %v716 = vld [vmem:[#allocation6 + $0x980] sm:$0xff]
      %v717 = vld [vmem:[#allocation6 + $0x988] sm:$0xff]
      %v718 = vld [vmem:[#allocation6 + $0x990] sm:$0xff]
      %v719 = vld [vmem:[#allocation6 + $0x998] sm:$0xff]
      %v720 = vld [vmem:[#allocation6 + $0x9a0] sm:$0xff]
      %v721 = vld [vmem:[#allocation6 + $0x9a8] sm:$0xff]
      %v722 = vld [vmem:[#allocation6 + $0x9b0] sm:$0xff]
      %v723 = vld [vmem:[#allocation6 + $0x9b8] sm:$0xff]
      %v724 = vld [vmem:[#allocation6 + $0x9c0] sm:$0xff]
      %v725 = vld [vmem:[#allocation6 + $0x9c8] sm:$0xff]
      %v726 = vld [vmem:[#allocation6 + $0x9d0] sm:$0xff]
      %v727 = vld [vmem:[#allocation6 + $0x9d8] sm:$0xff]
      %v728 = vld [vmem:[#allocation6 + $0x9e0] sm:$0xff]
      %v729 = vld [vmem:[#allocation6 + $0x9e8] sm:$0xff]
      %v730 = vld [vmem:[#allocation6 + $0x9f0] sm:$0xff]
      %v731 = vld [vmem:[#allocation6 + $0x9f8] sm:$0xff]
      %v732 = vld [vmem:[#allocation6 + $0xa00] sm:$0xff]
      %v733 = vld [vmem:[#allocation6 + $0xa08] sm:$0xff]
      %v734 = vld [vmem:[#allocation6 + $0xa10] sm:$0xff]
      %v735 = vld [vmem:[#allocation6 + $0xa18] sm:$0xff]
      %v736 = vld [vmem:[#allocation6 + $0xa20] sm:$0xff]
      %v737 = vld [vmem:[#allocation6 + $0xa28] sm:$0xff]
      %v738 = vld [vmem:[#allocation6 + $0xa30] sm:$0xff]
      %v739 = vld [vmem:[#allocation6 + $0xa38] sm:$0xff]
      %v740 = vld [vmem:[#allocation6 + $0xa40] sm:$0xff]
      %v741 = vld [vmem:[#allocation6 + $0xa48] sm:$0xff]
      %v742 = vld [vmem:[#allocation6 + $0xa50] sm:$0xff]
      %v743 = vld [vmem:[#allocation6 + $0xa58] sm:$0xff]
      %v744 = vld [vmem:[#allocation6 + $0xa60] sm:$0xff]
      %v745 = vld [vmem:[#allocation6 + $0xa68] sm:$0xff]
      %v746 = vld [vmem:[#allocation6 + $0xa70] sm:$0xff]
      %v747 = vld [vmem:[#allocation6 + $0xa78] sm:$0xff]
      %v748 = vld [vmem:[#allocation6 + $0xa80] sm:$0xff]
      %v749 = vld [vmem:[#allocation6 + $0xa88] sm:$0xff]
      %v750 = vld [vmem:[#allocation6 + $0xa90] sm:$0xff]
      %v751 = vld [vmem:[#allocation6 + $0xa98] sm:$0xff]
      %v752 = vld [vmem:[#allocation6 + $0xaa0] sm:$0xff]
      %v753 = vld [vmem:[#allocation6 + $0xaa8] sm:$0xff]
      %v754 = vld [vmem:[#allocation6 + $0xab0] sm:$0xff]
      %v755 = vld [vmem:[#allocation6 + $0xab8] sm:$0xff]
      %v756 = vld [vmem:[#allocation6 + $0xac0] sm:$0xff]
      %v757 = vld [vmem:[#allocation6 + $0xac8] sm:$0xff]
      %v758 = vld [vmem:[#allocation6 + $0xad0] sm:$0xff]
      %v759 = vld [vmem:[#allocation6 + $0xad8] sm:$0xff]
      %v760 = vld [vmem:[#allocation6 + $0xae0] sm:$0xff]
      %v761 = vld [vmem:[#allocation6 + $0xae8] sm:$0xff]
      %v762 = vld [vmem:[#allocation6 + $0xaf0] sm:$0xff]
      %v763 = vld [vmem:[#allocation6 + $0xaf8] sm:$0xff]
      %v764 = vld [vmem:[#allocation6 + $0xb00] sm:$0xff]
      %v765 = vld [vmem:[#allocation6 + $0xb08] sm:$0xff]
      %v766 = vld [vmem:[#allocation6 + $0xb10] sm:$0xff]
      %v767 = vld [vmem:[#allocation6 + $0xb18] sm:$0xff]
      %v768 = vld [vmem:[#allocation6 + $0xb20] sm:$0xff]
      %v769 = vld [vmem:[#allocation6 + $0xb28] sm:$0xff]
      %v770 = vld [vmem:[#allocation6 + $0xb30] sm:$0xff]
      %v771 = vld [vmem:[#allocation6 + $0xb38] sm:$0xff]
      %v772 = vld [vmem:[#allocation6 + $0xb40] sm:$0xff]
      %v773 = vld [vmem:[#allocation6 + $0xb48] sm:$0xff]
      %v774 = vld [vmem:[#allocation6 + $0xb50] sm:$0xff]
      %v775 = vld [vmem:[#allocation6 + $0xb58] sm:$0xff]
      %v776 = vld [vmem:[#allocation6 + $0xb60] sm:$0xff]
      %v777 = vld [vmem:[#allocation6 + $0xb68] sm:$0xff]
      %v778 = vld [vmem:[#allocation6 + $0xb70] sm:$0xff]
      %v779 = vld [vmem:[#allocation6 + $0xb78] sm:$0xff]
      %v780 = vld [vmem:[#allocation6 + $0xb80] sm:$0xff]
      %v781 = vld [vmem:[#allocation6 + $0xb88] sm:$0xff]
      %v782 = vld [vmem:[#allocation6 + $0xb90] sm:$0xff]
      %v783 = vld [vmem:[#allocation6 + $0xb98] sm:$0xff]
      %v784 = vld [vmem:[#allocation6 + $0xba0] sm:$0xff]
      %v785 = vld [vmem:[#allocation6 + $0xba8] sm:$0xff]
      %v786 = vld [vmem:[#allocation6 + $0xbb0] sm:$0xff]
      %v787 = vld [vmem:[#allocation6 + $0xbb8] sm:$0xff]
      %v788 = vld [vmem:[#allocation6 + $0xbc0] sm:$0xff]
      %v789 = vld [vmem:[#allocation6 + $0xbc8] sm:$0xff]
      %v790 = vld [vmem:[#allocation6 + $0xbd0] sm:$0xff]
      %v791 = vld [vmem:[#allocation6 + $0xbd8] sm:$0xff]
      %v792 = vld [vmem:[#allocation6 + $0xbe0] sm:$0xff]
      %v793 = vld [vmem:[#allocation6 + $0xbe8] sm:$0xff]
      %v794 = vld [vmem:[#allocation6 + $0xbf0] sm:$0xff]
      %v795 = vld [vmem:[#allocation6 + $0xbf8] sm:$0xff]
      %v796 = vld [vmem:[#allocation6 + $0xc00] sm:$0xff]
      %v797 = vld [vmem:[#allocation6 + $0xc08] sm:$0xff]
      %v798 = vld [vmem:[#allocation6 + $0xc10] sm:$0xff]
      %v799 = vld [vmem:[#allocation6 + $0xc18] sm:$0xff]
      %v800 = vld [vmem:[#allocation6 + $0xc20] sm:$0xff]
      %v801 = vld [vmem:[#allocation6 + $0xc28] sm:$0xff]
      %v802 = vld [vmem:[#allocation6 + $0xc30] sm:$0xff]
      %v803 = vld [vmem:[#allocation6 + $0xc38] sm:$0xff]
      %v804 = vld [vmem:[#allocation6 + $0xc40] sm:$0xff]
      %v805 = vld [vmem:[#allocation6 + $0xc48] sm:$0xff]
      %v806 = vld [vmem:[#allocation6 + $0xc50] sm:$0xff]
      %v807 = vld [vmem:[#allocation6 + $0xc58] sm:$0xff]
      %v808 = vld [vmem:[#allocation6 + $0xc60] sm:$0xff]
      %v809 = vld [vmem:[#allocation6 + $0xc68] sm:$0xff]
      %v810 = vld [vmem:[#allocation6 + $0xc70] sm:$0xff]
      %v811 = vld [vmem:[#allocation6 + $0xc78] sm:$0xff]
      %v812 = vld [vmem:[#allocation6 + $0xc80] sm:$0xff]
      %v813 = vld [vmem:[#allocation6 + $0xc88] sm:$0xff]
      %v814 = vld [vmem:[#allocation6 + $0xc90] sm:$0xff]
      %v815 = vld [vmem:[#allocation6 + $0xc98] sm:$0xff]
      %v816 = vld [vmem:[#allocation6 + $0xca0] sm:$0xff]
      %v817 = vld [vmem:[#allocation6 + $0xca8] sm:$0xff]
      %v818 = vld [vmem:[#allocation6 + $0xcb0] sm:$0xff]
      %v819 = vld [vmem:[#allocation6 + $0xcb8] sm:$0xff]
      %v820 = vld [vmem:[#allocation6 + $0xcc0] sm:$0xff]
      %v821 = vld [vmem:[#allocation6 + $0xcc8] sm:$0xff]
      %v822 = vld [vmem:[#allocation6 + $0xcd0] sm:$0xff]
      %v823 = vld [vmem:[#allocation6 + $0xcd8] sm:$0xff]
      %v824 = vld [vmem:[#allocation6 + $0xce0] sm:$0xff]
      %v825 = vld [vmem:[#allocation6 + $0xce8] sm:$0xff]
      %v826 = vld [vmem:[#allocation6 + $0xcf0] sm:$0xff]
      %v827 = vld [vmem:[#allocation6 + $0xcf8] sm:$0xff]
      %v828 = vld [vmem:[#allocation6 + $0xd00] sm:$0xff]
      %v829 = vld [vmem:[#allocation6 + $0xd08] sm:$0xff]
      %v830 = vld [vmem:[#allocation6 + $0xd10] sm:$0xff]
      %v831 = vld [vmem:[#allocation6 + $0xd18] sm:$0xff]
      %v832 = vld [vmem:[#allocation6 + $0xd20] sm:$0xff]
      %v833 = vld [vmem:[#allocation6 + $0xd28] sm:$0xff]
      %v834 = vld [vmem:[#allocation6 + $0xd30] sm:$0xff]
      %v835 = vld [vmem:[#allocation6 + $0xd38] sm:$0xff]
      %v836 = vld [vmem:[#allocation6 + $0xd40] sm:$0xff]
      %v837 = vld [vmem:[#allocation6 + $0xd48] sm:$0xff]
      %v838 = vld [vmem:[#allocation6 + $0xd50] sm:$0xff]
      %v839 = vld [vmem:[#allocation6 + $0xd58] sm:$0xff]
      %v840 = vld [vmem:[#allocation6 + $0xd60] sm:$0xff]
      %v841 = vld [vmem:[#allocation6 + $0xd68] sm:$0xff]
      %v842 = vld [vmem:[#allocation6 + $0xd70] sm:$0xff]
      %v843 = vld [vmem:[#allocation6 + $0xd78] sm:$0xff]
      %v844 = vld [vmem:[#allocation6 + $0xd80] sm:$0xff]
      %v845 = vld [vmem:[#allocation6 + $0xd88] sm:$0xff]
      %v846 = vld [vmem:[#allocation6 + $0xd90] sm:$0xff]
      %v847 = vld [vmem:[#allocation6 + $0xd98] sm:$0xff]
      %v848 = vld [vmem:[#allocation6 + $0xda0] sm:$0xff]
      %v849 = vld [vmem:[#allocation6 + $0xda8] sm:$0xff]
      %v850 = vld [vmem:[#allocation6 + $0xdb0] sm:$0xff]
      %v851 = vld [vmem:[#allocation6 + $0xdb8] sm:$0xff]
      %v852 = vld [vmem:[#allocation6 + $0xdc0] sm:$0xff]
      %v853 = vld [vmem:[#allocation6 + $0xdc8] sm:$0xff]
      %v854 = vld [vmem:[#allocation6 + $0xdd0] sm:$0xff]
      %v855 = vld [vmem:[#allocation6 + $0xdd8] sm:$0xff]
      %v856 = vld [vmem:[#allocation6 + $0xde0] sm:$0xff]
      %v857 = vld [vmem:[#allocation6 + $0xde8] sm:$0xff]
      %v858 = vld [vmem:[#allocation6 + $0xdf0] sm:$0xff]
      %v859 = vld [vmem:[#allocation6 + $0xdf8] sm:$0xff]
      %v860 = vld [vmem:[#allocation6 + $0xe00] sm:$0xff]
      %v861 = vld [vmem:[#allocation6 + $0xe08] sm:$0xff]
      %v862 = vld [vmem:[#allocation6 + $0xe10] sm:$0xff]
      %v863 = vld [vmem:[#allocation6 + $0xe18] sm:$0xff]
      %v864 = vld [vmem:[#allocation6 + $0xe20] sm:$0xff]
      %v865 = vld [vmem:[#allocation6 + $0xe28] sm:$0xff]
      %v866 = vld [vmem:[#allocation6 + $0xe30] sm:$0xff]
      %v867 = vld [vmem:[#allocation6 + $0xe38] sm:$0xff]
      %v868 = vld [vmem:[#allocation6 + $0xe40] sm:$0xff]
      %v869 = vld [vmem:[#allocation6 + $0xe48] sm:$0xff]
      %v870 = vld [vmem:[#allocation6 + $0xe50] sm:$0xff]
      %v871 = vld [vmem:[#allocation6 + $0xe58] sm:$0xff]
      %v872 = vld [vmem:[#allocation6 + $0xe60] sm:$0xff]
      %v873 = vld [vmem:[#allocation6 + $0xe68] sm:$0xff]
      %v874 = vld [vmem:[#allocation6 + $0xe70] sm:$0xff]
      %v875 = vld [vmem:[#allocation6 + $0xe78] sm:$0xff]
      %v876 = vld [vmem:[#allocation6 + $0xe80] sm:$0xff]
      %v877 = vld [vmem:[#allocation6 + $0xe88] sm:$0xff]
      %v878 = vld [vmem:[#allocation6 + $0xe90] sm:$0xff]
      %v879 = vld [vmem:[#allocation6 + $0xe98] sm:$0xff]
      %v880 = vld [vmem:[#allocation6 + $0xea0] sm:$0xff]
      %v881 = vld [vmem:[#allocation6 + $0xea8] sm:$0xff]
      %v882 = vld [vmem:[#allocation6 + $0xeb0] sm:$0xff]
      %v883 = vld [vmem:[#allocation6 + $0xeb8] sm:$0xff]
      %v884 = vld [vmem:[#allocation6 + $0xec0] sm:$0xff]
      %v885 = vld [vmem:[#allocation6 + $0xec8] sm:$0xff]
      %v886 = vld [vmem:[#allocation6 + $0xed0] sm:$0xff]
      %v887 = vld [vmem:[#allocation6 + $0xed8] sm:$0xff]
      %v888 = vld [vmem:[#allocation6 + $0xee0] sm:$0xff]
      %v889 = vld [vmem:[#allocation6 + $0xee8] sm:$0xff]
      %v890 = vld [vmem:[#allocation6 + $0xef0] sm:$0xff]
      %v891 = vld [vmem:[#allocation6 + $0xef8] sm:$0xff]
      %v892 = vld [vmem:[#allocation6 + $0xf00] sm:$0xff]
      %v893 = vld [vmem:[#allocation6 + $0xf08] sm:$0xff]
      %v894 = vld [vmem:[#allocation6 + $0xf10] sm:$0xff]
      %v895 = vld [vmem:[#allocation6 + $0xf18] sm:$0xff]
      %v896 = vld [vmem:[#allocation6 + $0xf20] sm:$0xff]
      %v897 = vld [vmem:[#allocation6 + $0xf28] sm:$0xff]
      %v898 = vld [vmem:[#allocation6 + $0xf30] sm:$0xff]
      %v899 = vld [vmem:[#allocation6 + $0xf38] sm:$0xff]
      %v900 = vld [vmem:[#allocation6 + $0xf40] sm:$0xff]
      %v901 = vld [vmem:[#allocation6 + $0xf48] sm:$0xff]
      %v902 = vld [vmem:[#allocation6 + $0xf50] sm:$0xff]
      %v903 = vld [vmem:[#allocation6 + $0xf58] sm:$0xff]
      %v904 = vld [vmem:[#allocation6 + $0xf60] sm:$0xff]
      %v905 = vld [vmem:[#allocation6 + $0xf68] sm:$0xff]
      %v906 = vld [vmem:[#allocation6 + $0xf70] sm:$0xff]
      %v907 = vld [vmem:[#allocation6 + $0xf78] sm:$0xff]
      %v908 = vld [vmem:[#allocation6 + $0xf80] sm:$0xff]
      %v909 = vld [vmem:[#allocation6 + $0xf88] sm:$0xff]
      %v910 = vld [vmem:[#allocation6 + $0xf90] sm:$0xff]
      %v911 = vld [vmem:[#allocation6 + $0xf98] sm:$0xff]
      %v912 = vld [vmem:[#allocation6 + $0xfa0] sm:$0xff]
      %v913 = vld [vmem:[#allocation6 + $0xfa8] sm:$0xff]
      %v914 = vld [vmem:[#allocation6 + $0xfb0] sm:$0xff]
      %v915 = vld [vmem:[#allocation6 + $0xfb8] sm:$0xff]
      %v916 = vld [vmem:[#allocation6 + $0xfc0] sm:$0xff]
      %v917 = vld [vmem:[#allocation6 + $0xfc8] sm:$0xff]
      %v918 = vld [vmem:[#allocation6 + $0xfd0] sm:$0xff]
      %v919 = vld [vmem:[#allocation6 + $0xfd8] sm:$0xff]
      %v920 = vld [vmem:[#allocation6 + $0xfe0] sm:$0xff]
      %v921 = vld [vmem:[#allocation6 + $0xfe8] sm:$0xff]
      %v922 = vld [vmem:[#allocation6 + $0xff0] sm:$0xff]
      %v923 = vld [vmem:[#allocation6 + $0xff8] sm:$0xff]
      %v924 = vld [vmem:[#allocation8] sm:$0xff]
      %v926 = vperm.slane %v924, 0
      %v927 = vperm.slane %v924, 1
      %v928 = vperm.slane %v924, 2
      %v929 = vperm.slane %v924, 3
      %v930 = vperm.slane %v924, 4
      %v931 = vperm.slane %v924, 5
      %v932 = vperm.slane %v924, 6
      %v933 = vperm.slane %v924, 7
      %942 = vmatpush.msra.mxu0 %v532
      %943 = vmatpush.msra.mxu0 %v524
      %944 = vmatpush.msra.mxu0 %v516
      %945 = vmatpush.msra.mxu0 %v508
      %946 = vmatpush.msra.mxu0 %v500
      %947 = vmatpush.msra.mxu0 %v492
      %948 = vmatpush.msra.mxu0 %v484
      %949 = vmatpush.msra.mxu0 %v476
      %950 = vmatpush.msra.mxu0 %v468
      %951 = vmatpush.msra.mxu0 %v460
      %952 = vmatpush.msra.mxu0 %v452
      %953 = vmatpush.msra.mxu0 %v444
      %954 = vmatpush.msra.mxu0 %v436
      %955 = vmatpush.msra.mxu0 %v428
      %956 = vmatpush.msra.mxu0 %v420
      %957 = vmatpush.msra.mxu0 %v412
      %958 = vmatmul.f32.gmra.mxu0 %v408
      %v959 = vpop.f32.mrf.mxu0
      %v960 = vadd.f32 %v926, %v959
      %961 = vdwg.mxu0
      %962 = vmatpush.msra.mxu0 %v660
      %963 = vmatpush.msra.mxu0 %v652
      %964 = vmatpush.msra.mxu0 %v644
      %965 = vmatpush.msra.mxu0 %v636
      %966 = vmatpush.msra.mxu0 %v628
      %967 = vmatpush.msra.mxu0 %v620
      %968 = vmatpush.msra.mxu0 %v612
      %969 = vmatpush.msra.mxu0 %v604
      %970 = vmatpush.msra.mxu0 %v596
      %971 = vmatpush.msra.mxu0 %v588
      %972 = vmatpush.msra.mxu0 %v580
      %973 = vmatpush.msra.mxu0 %v572
      %974 = vmatpush.msra.mxu0 %v564
      %975 = vmatpush.msra.mxu0 %v556
      %976 = vmatpush.msra.mxu0 %v548
      %977 = vmatpush.msra.mxu0 %v540
      %978 = vmatmul.f32.gmra.mxu0 %v409
      %v979 = vpop.f32.mrf.mxu0
      %v980 = vadd.f32 %v960, %v979
      %981 = vdwg.mxu0
      %982 = vmatpush.msra.mxu0 %v788
      %983 = vmatpush.msra.mxu0 %v780
      %984 = vmatpush.msra.mxu0 %v772
      %985 = vmatpush.msra.mxu0 %v764
      %986 = vmatpush.msra.mxu0 %v756
      %987 = vmatpush.msra.mxu0 %v748
      %988 = vmatpush.msra.mxu0 %v740
      %989 = vmatpush.msra.mxu0 %v732
      %990 = vmatpush.msra.mxu0 %v724
      %991 = vmatpush.msra.mxu0 %v716
      %992 = vmatpush.msra.mxu0 %v708
      %993 = vmatpush.msra.mxu0 %v700
      %994 = vmatpush.msra.mxu0 %v692
      %995 = vmatpush.msra.mxu0 %v684
      %996 = vmatpush.msra.mxu0 %v676
      %997 = vmatpush.msra.mxu0 %v668
      %998 = vmatmul.f32.gmra.mxu0 %v410
      %v999 = vpop.f32.mrf.mxu0
      %v1000 = vadd.f32 %v980, %v999
      %1001 = vdwg.mxu0
      %1002 = vmatpush.msra.mxu0 %v916
      %1003 = vmatpush.msra.mxu0 %v908
      %1004 = vmatpush.msra.mxu0 %v900
      %1005 = vmatpush.msra.mxu0 %v892
      %1006 = vmatpush.msra.mxu0 %v884
      %1007 = vmatpush.msra.mxu0 %v876
      %1008 = vmatpush.msra.mxu0 %v868
      %1009 = vmatpush.msra.mxu0 %v860
      %1010 = vmatpush.msra.mxu0 %v852
      %1011 = vmatpush.msra.mxu0 %v844
      %1012 = vmatpush.msra.mxu0 %v836
      %1013 = vmatpush.msra.mxu0 %v828
      %1014 = vmatpush.msra.mxu0 %v820
      %1015 = vmatpush.msra.mxu0 %v812
      %1016 = vmatpush.msra.mxu0 %v804
      %1017 = vmatpush.msra.mxu0 %v796
      %1018 = vmatmul.f32.gmra.mxu0 %v411
      %v1019 = vpop.f32.mrf.mxu0
      %v1020 = vadd.f32 %v1000, %v1019
      %1021 = vdwg.mxu0
      %1022 = vmatpush.msra.mxu0 %v533
      %1023 = vmatpush.msra.mxu0 %v525
      %1024 = vmatpush.msra.mxu0 %v517
      %1025 = vmatpush.msra.mxu0 %v509
      %1026 = vmatpush.msra.mxu0 %v501
      %1027 = vmatpush.msra.mxu0 %v493
      %1028 = vmatpush.msra.mxu0 %v485
      %1029 = vmatpush.msra.mxu0 %v477
      %1030 = vmatpush.msra.mxu0 %v469
      %1031 = vmatpush.msra.mxu0 %v461
      %1032 = vmatpush.msra.mxu0 %v453
      %1033 = vmatpush.msra.mxu0 %v445
      %1034 = vmatpush.msra.mxu0 %v437
      %1035 = vmatpush.msra.mxu0 %v429
      %1036 = vmatpush.msra.mxu0 %v421
      %1037 = vmatpush.msra.mxu0 %v413
      %1038 = vmatmul.f32.gmra.mxu0 %v408
      %v1039 = vpop.f32.mrf.mxu0
      %v1040 = vadd.f32 %v927, %v1039
      %1041 = vdwg.mxu0
      %1042 = vmatpush.msra.mxu0 %v661
      %1043 = vmatpush.msra.mxu0 %v653
      %1044 = vmatpush.msra.mxu0 %v645
      %1045 = vmatpush.msra.mxu0 %v637
      %1046 = vmatpush.msra.mxu0 %v629
      %1047 = vmatpush.msra.mxu0 %v621
      %1048 = vmatpush.msra.mxu0 %v613
      %1049 = vmatpush.msra.mxu0 %v605
      %1050 = vmatpush.msra.mxu0 %v597
      %1051 = vmatpush.msra.mxu0 %v589
      %1052 = vmatpush.msra.mxu0 %v581
      %1053 = vmatpush.msra.mxu0 %v573
      %1054 = vmatpush.msra.mxu0 %v565
      %1055 = vmatpush.msra.mxu0 %v557
      %1056 = vmatpush.msra.mxu0 %v549
      %1057 = vmatpush.msra.mxu0 %v541
      %1058 = vmatmul.f32.gmra.mxu0 %v409
      %v1059 = vpop.f32.mrf.mxu0
      %v1060 = vadd.f32 %v1040, %v1059
      %1061 = vdwg.mxu0
      %1062 = vmatpush.msra.mxu0 %v789
      %1063 = vmatpush.msra.mxu0 %v781
      %1064 = vmatpush.msra.mxu0 %v773
      %1065 = vmatpush.msra.mxu0 %v765
      %1066 = vmatpush.msra.mxu0 %v757
      %1067 = vmatpush.msra.mxu0 %v749
      %1068 = vmatpush.msra.mxu0 %v741
      %1069 = vmatpush.msra.mxu0 %v733
      %1070 = vmatpush.msra.mxu0 %v725
      %1071 = vmatpush.msra.mxu0 %v717
      %1072 = vmatpush.msra.mxu0 %v709
      %1073 = vmatpush.msra.mxu0 %v701
      %1074 = vmatpush.msra.mxu0 %v693
      %1075 = vmatpush.msra.mxu0 %v685
      %1076 = vmatpush.msra.mxu0 %v677
      %1077 = vmatpush.msra.mxu0 %v669
      %1078 = vmatmul.f32.gmra.mxu0 %v410
      %v1079 = vpop.f32.mrf.mxu0
      %v1080 = vadd.f32 %v1060, %v1079
      %1081 = vdwg.mxu0
      %1082 = vmatpush.msra.mxu0 %v917
      %1083 = vmatpush.msra.mxu0 %v909
      %1084 = vmatpush.msra.mxu0 %v901
      %1085 = vmatpush.msra.mxu0 %v893
      %1086 = vmatpush.msra.mxu0 %v885
      %1087 = vmatpush.msra.mxu0 %v877
      %1088 = vmatpush.msra.mxu0 %v869
      %1089 = vmatpush.msra.mxu0 %v861
      %1090 = vmatpush.msra.mxu0 %v853
      %1091 = vmatpush.msra.mxu0 %v845
      %1092 = vmatpush.msra.mxu0 %v837
      %1093 = vmatpush.msra.mxu0 %v829
      %1094 = vmatpush.msra.mxu0 %v821
      %1095 = vmatpush.msra.mxu0 %v813
      %1096 = vmatpush.msra.mxu0 %v805
      %1097 = vmatpush.msra.mxu0 %v797
      %1098 = vmatmul.f32.gmra.mxu0 %v411
      %v1099 = vpop.f32.mrf.mxu0
      %v1100 = vadd.f32 %v1080, %v1099
      %1101 = vdwg.mxu0
      %1102 = vmatpush.msra.mxu0 %v534
      %1103 = vmatpush.msra.mxu0 %v526
      %1104 = vmatpush.msra.mxu0 %v518
      %1105 = vmatpush.msra.mxu0 %v510
      %1106 = vmatpush.msra.mxu0 %v502
      %1107 = vmatpush.msra.mxu0 %v494
      %1108 = vmatpush.msra.mxu0 %v486
      %1109 = vmatpush.msra.mxu0 %v478
      %1110 = vmatpush.msra.mxu0 %v470
      %1111 = vmatpush.msra.mxu0 %v462
      %1112 = vmatpush.msra.mxu0 %v454
      %1113 = vmatpush.msra.mxu0 %v446
      %1114 = vmatpush.msra.mxu0 %v438
      %1115 = vmatpush.msra.mxu0 %v430
      %1116 = vmatpush.msra.mxu0 %v422
      %1117 = vmatpush.msra.mxu0 %v414
      %1118 = vmatmul.f32.gmra.mxu0 %v408
      %v1119 = vpop.f32.mrf.mxu0
      %v1120 = vadd.f32 %v928, %v1119
      %1121 = vdwg.mxu0
      %1122 = vmatpush.msra.mxu0 %v662
      %1123 = vmatpush.msra.mxu0 %v654
      %1124 = vmatpush.msra.mxu0 %v646
      %1125 = vmatpush.msra.mxu0 %v638
      %1126 = vmatpush.msra.mxu0 %v630
      %1127 = vmatpush.msra.mxu0 %v622
      %1128 = vmatpush.msra.mxu0 %v614
      %1129 = vmatpush.msra.mxu0 %v606
      %1130 = vmatpush.msra.mxu0 %v598
      %1131 = vmatpush.msra.mxu0 %v590
      %1132 = vmatpush.msra.mxu0 %v582
      %1133 = vmatpush.msra.mxu0 %v574
      %1134 = vmatpush.msra.mxu0 %v566
      %1135 = vmatpush.msra.mxu0 %v558
      %1136 = vmatpush.msra.mxu0 %v550
      %1137 = vmatpush.msra.mxu0 %v542
      %1138 = vmatmul.f32.gmra.mxu0 %v409
      %v1139 = vpop.f32.mrf.mxu0
      %v1140 = vadd.f32 %v1120, %v1139
      %1141 = vdwg.mxu0
      %1142 = vmatpush.msra.mxu0 %v790
      %1143 = vmatpush.msra.mxu0 %v782
      %1144 = vmatpush.msra.mxu0 %v774
      %1145 = vmatpush.msra.mxu0 %v766
      %1146 = vmatpush.msra.mxu0 %v758
      %1147 = vmatpush.msra.mxu0 %v750
      %1148 = vmatpush.msra.mxu0 %v742
      %1149 = vmatpush.msra.mxu0 %v734
      %1150 = vmatpush.msra.mxu0 %v726
      %1151 = vmatpush.msra.mxu0 %v718
      %1152 = vmatpush.msra.mxu0 %v710
      %1153 = vmatpush.msra.mxu0 %v702
      %1154 = vmatpush.msra.mxu0 %v694
      %1155 = vmatpush.msra.mxu0 %v686
      %1156 = vmatpush.msra.mxu0 %v678
      %1157 = vmatpush.msra.mxu0 %v670
      %1158 = vmatmul.f32.gmra.mxu0 %v410
      %v1159 = vpop.f32.mrf.mxu0
      %v1160 = vadd.f32 %v1140, %v1159
      %1161 = vdwg.mxu0
      %1162 = vmatpush.msra.mxu0 %v918
      %1163 = vmatpush.msra.mxu0 %v910
      %1164 = vmatpush.msra.mxu0 %v902
      %1165 = vmatpush.msra.mxu0 %v894
      %1166 = vmatpush.msra.mxu0 %v886
      %1167 = vmatpush.msra.mxu0 %v878
      %1168 = vmatpush.msra.mxu0 %v870
      %1169 = vmatpush.msra.mxu0 %v862
      %1170 = vmatpush.msra.mxu0 %v854
      %1171 = vmatpush.msra.mxu0 %v846
      %1172 = vmatpush.msra.mxu0 %v838
      %1173 = vmatpush.msra.mxu0 %v830
      %1174 = vmatpush.msra.mxu0 %v822
      %1175 = vmatpush.msra.mxu0 %v814
      %1176 = vmatpush.msra.mxu0 %v806
      %1177 = vmatpush.msra.mxu0 %v798
      %1178 = vmatmul.f32.gmra.mxu0 %v411
      %v1179 = vpop.f32.mrf.mxu0
      %v1180 = vadd.f32 %v1160, %v1179
      %1181 = vdwg.mxu0
      %1182 = vmatpush.msra.mxu0 %v535
      %1183 = vmatpush.msra.mxu0 %v527
      %1184 = vmatpush.msra.mxu0 %v519
      %1185 = vmatpush.msra.mxu0 %v511
      %1186 = vmatpush.msra.mxu0 %v503
      %1187 = vmatpush.msra.mxu0 %v495
      %1188 = vmatpush.msra.mxu0 %v487
      %1189 = vmatpush.msra.mxu0 %v479
      %1190 = vmatpush.msra.mxu0 %v471
      %1191 = vmatpush.msra.mxu0 %v463
      %1192 = vmatpush.msra.mxu0 %v455
      %1193 = vmatpush.msra.mxu0 %v447
      %1194 = vmatpush.msra.mxu0 %v439
      %1195 = vmatpush.msra.mxu0 %v431
      %1196 = vmatpush.msra.mxu0 %v423
      %1197 = vmatpush.msra.mxu0 %v415
      %1198 = vmatmul.f32.gmra.mxu0 %v408
      %v1199 = vpop.f32.mrf.mxu0
      %v1200 = vadd.f32 %v929, %v1199
      %1201 = vdwg.mxu0
      %1202 = vmatpush.msra.mxu0 %v663
      %1203 = vmatpush.msra.mxu0 %v655
      %1204 = vmatpush.msra.mxu0 %v647
      %1205 = vmatpush.msra.mxu0 %v639
      %1206 = vmatpush.msra.mxu0 %v631
      %1207 = vmatpush.msra.mxu0 %v623
      %1208 = vmatpush.msra.mxu0 %v615
      %1209 = vmatpush.msra.mxu0 %v607
      %1210 = vmatpush.msra.mxu0 %v599
      %1211 = vmatpush.msra.mxu0 %v591
      %1212 = vmatpush.msra.mxu0 %v583
      %1213 = vmatpush.msra.mxu0 %v575
      %1214 = vmatpush.msra.mxu0 %v567
      %1215 = vmatpush.msra.mxu0 %v559
      %1216 = vmatpush.msra.mxu0 %v551
      %1217 = vmatpush.msra.mxu0 %v543
      %1218 = vmatmul.f32.gmra.mxu0 %v409
      %v1219 = vpop.f32.mrf.mxu0
      %v1220 = vadd.f32 %v1200, %v1219
      %1221 = vdwg.mxu0
      %1222 = vmatpush.msra.mxu0 %v791
      %1223 = vmatpush.msra.mxu0 %v783
      %1224 = vmatpush.msra.mxu0 %v775
      %1225 = vmatpush.msra.mxu0 %v767
      %1226 = vmatpush.msra.mxu0 %v759
      %1227 = vmatpush.msra.mxu0 %v751
      %1228 = vmatpush.msra.mxu0 %v743
      %1229 = vmatpush.msra.mxu0 %v735
      %1230 = vmatpush.msra.mxu0 %v727
      %1231 = vmatpush.msra.mxu0 %v719
      %1232 = vmatpush.msra.mxu0 %v711
      %1233 = vmatpush.msra.mxu0 %v703
      %1234 = vmatpush.msra.mxu0 %v695
      %1235 = vmatpush.msra.mxu0 %v687
      %1236 = vmatpush.msra.mxu0 %v679
      %1237 = vmatpush.msra.mxu0 %v671
      %1238 = vmatmul.f32.gmra.mxu0 %v410
      %v1239 = vpop.f32.mrf.mxu0
      %v1240 = vadd.f32 %v1220, %v1239
      %1241 = vdwg.mxu0
      %1242 = vmatpush.msra.mxu0 %v919
      %1243 = vmatpush.msra.mxu0 %v911
      %1244 = vmatpush.msra.mxu0 %v903
      %1245 = vmatpush.msra.mxu0 %v895
      %1246 = vmatpush.msra.mxu0 %v887
      %1247 = vmatpush.msra.mxu0 %v879
      %1248 = vmatpush.msra.mxu0 %v871
      %1249 = vmatpush.msra.mxu0 %v863
      %1250 = vmatpush.msra.mxu0 %v855
      %1251 = vmatpush.msra.mxu0 %v847
      %1252 = vmatpush.msra.mxu0 %v839
      %1253 = vmatpush.msra.mxu0 %v831
      %1254 = vmatpush.msra.mxu0 %v823
      %1255 = vmatpush.msra.mxu0 %v815
      %1256 = vmatpush.msra.mxu0 %v807
      %1257 = vmatpush.msra.mxu0 %v799
      %1258 = vmatmul.f32.gmra.mxu0 %v411
      %v1259 = vpop.f32.mrf.mxu0
      %v1260 = vadd.f32 %v1240, %v1259
      %1261 = vdwg.mxu0
      %1262 = vmatpush.msra.mxu0 %v536
      %1263 = vmatpush.msra.mxu0 %v528
      %1264 = vmatpush.msra.mxu0 %v520
      %1265 = vmatpush.msra.mxu0 %v512
      %1266 = vmatpush.msra.mxu0 %v504
      %1267 = vmatpush.msra.mxu0 %v496
      %1268 = vmatpush.msra.mxu0 %v488
      %1269 = vmatpush.msra.mxu0 %v480
      %1270 = vmatpush.msra.mxu0 %v472
      %1271 = vmatpush.msra.mxu0 %v464
      %1272 = vmatpush.msra.mxu0 %v456
      %1273 = vmatpush.msra.mxu0 %v448
      %1274 = vmatpush.msra.mxu0 %v440
      %1275 = vmatpush.msra.mxu0 %v432
      %1276 = vmatpush.msra.mxu0 %v424
      %1277 = vmatpush.msra.mxu0 %v416
      %1278 = vmatmul.f32.gmra.mxu0 %v408
      %v1279 = vpop.f32.mrf.mxu0
      %v1280 = vadd.f32 %v930, %v1279
      %1281 = vdwg.mxu0
      %1282 = vmatpush.msra.mxu0 %v664
      %1283 = vmatpush.msra.mxu0 %v656
      %1284 = vmatpush.msra.mxu0 %v648
      %1285 = vmatpush.msra.mxu0 %v640
      %1286 = vmatpush.msra.mxu0 %v632
      %1287 = vmatpush.msra.mxu0 %v624
      %1288 = vmatpush.msra.mxu0 %v616
      %1289 = vmatpush.msra.mxu0 %v608
      %1290 = vmatpush.msra.mxu0 %v600
      %1291 = vmatpush.msra.mxu0 %v592
      %1292 = vmatpush.msra.mxu0 %v584
      %1293 = vmatpush.msra.mxu0 %v576
      %1294 = vmatpush.msra.mxu0 %v568
      %1295 = vmatpush.msra.mxu0 %v560
      %1296 = vmatpush.msra.mxu0 %v552
      %1297 = vmatpush.msra.mxu0 %v544
      %1298 = vmatmul.f32.gmra.mxu0 %v409
      %v1299 = vpop.f32.mrf.mxu0
      %v1300 = vadd.f32 %v1280, %v1299
      %1301 = vdwg.mxu0
      %1302 = vmatpush.msra.mxu0 %v792
      %1303 = vmatpush.msra.mxu0 %v784
      %1304 = vmatpush.msra.mxu0 %v776
      %1305 = vmatpush.msra.mxu0 %v768
      %1306 = vmatpush.msra.mxu0 %v760
      %1307 = vmatpush.msra.mxu0 %v752
      %1308 = vmatpush.msra.mxu0 %v744
      %1309 = vmatpush.msra.mxu0 %v736
      %1310 = vmatpush.msra.mxu0 %v728
      %1311 = vmatpush.msra.mxu0 %v720
      %1312 = vmatpush.msra.mxu0 %v712
      %1313 = vmatpush.msra.mxu0 %v704
      %1314 = vmatpush.msra.mxu0 %v696
      %1315 = vmatpush.msra.mxu0 %v688
      %1316 = vmatpush.msra.mxu0 %v680
      %1317 = vmatpush.msra.mxu0 %v672
      %1318 = vmatmul.f32.gmra.mxu0 %v410
      %v1319 = vpop.f32.mrf.mxu0
      %v1320 = vadd.f32 %v1300, %v1319
      %1321 = vdwg.mxu0
      %1322 = vmatpush.msra.mxu0 %v920
      %1323 = vmatpush.msra.mxu0 %v912
      %1324 = vmatpush.msra.mxu0 %v904
      %1325 = vmatpush.msra.mxu0 %v896
      %1326 = vmatpush.msra.mxu0 %v888
      %1327 = vmatpush.msra.mxu0 %v880
      %1328 = vmatpush.msra.mxu0 %v872
      %1329 = vmatpush.msra.mxu0 %v864
      %1330 = vmatpush.msra.mxu0 %v856
      %1331 = vmatpush.msra.mxu0 %v848
      %1332 = vmatpush.msra.mxu0 %v840
      %1333 = vmatpush.msra.mxu0 %v832
      %1334 = vmatpush.msra.mxu0 %v824
      %1335 = vmatpush.msra.mxu0 %v816
      %1336 = vmatpush.msra.mxu0 %v808
      %1337 = vmatpush.msra.mxu0 %v800
      %1338 = vmatmul.f32.gmra.mxu0 %v411
      %v1339 = vpop.f32.mrf.mxu0
      %v1340 = vadd.f32 %v1320, %v1339
      %1341 = vdwg.mxu0
      %1342 = vmatpush.msra.mxu0 %v537
      %1343 = vmatpush.msra.mxu0 %v529
      %1344 = vmatpush.msra.mxu0 %v521
      %1345 = vmatpush.msra.mxu0 %v513
      %1346 = vmatpush.msra.mxu0 %v505
      %1347 = vmatpush.msra.mxu0 %v497
      %1348 = vmatpush.msra.mxu0 %v489
      %1349 = vmatpush.msra.mxu0 %v481
      %1350 = vmatpush.msra.mxu0 %v473
      %1351 = vmatpush.msra.mxu0 %v465
      %1352 = vmatpush.msra.mxu0 %v457
      %1353 = vmatpush.msra.mxu0 %v449
      %1354 = vmatpush.msra.mxu0 %v441
      %1355 = vmatpush.msra.mxu0 %v433
      %1356 = vmatpush.msra.mxu0 %v425
      %1357 = vmatpush.msra.mxu0 %v417
      %1358 = vmatmul.f32.gmra.mxu0 %v408
      %v1359 = vpop.f32.mrf.mxu0
      %v1360 = vadd.f32 %v931, %v1359
      %1361 = vdwg.mxu0
      %1362 = vmatpush.msra.mxu0 %v665
      %1363 = vmatpush.msra.mxu0 %v657
      %1364 = vmatpush.msra.mxu0 %v649
      %1365 = vmatpush.msra.mxu0 %v641
      %1366 = vmatpush.msra.mxu0 %v633
      %1367 = vmatpush.msra.mxu0 %v625
      %1368 = vmatpush.msra.mxu0 %v617
      %1369 = vmatpush.msra.mxu0 %v609
      %1370 = vmatpush.msra.mxu0 %v601
      %1371 = vmatpush.msra.mxu0 %v593
      %1372 = vmatpush.msra.mxu0 %v585
      %1373 = vmatpush.msra.mxu0 %v577
      %1374 = vmatpush.msra.mxu0 %v569
      %1375 = vmatpush.msra.mxu0 %v561
      %1376 = vmatpush.msra.mxu0 %v553
      %1377 = vmatpush.msra.mxu0 %v545
      %1378 = vmatmul.f32.gmra.mxu0 %v409
      %v1379 = vpop.f32.mrf.mxu0
      %v1380 = vadd.f32 %v1360, %v1379
      %1381 = vdwg.mxu0
      %1382 = vmatpush.msra.mxu0 %v793
      %1383 = vmatpush.msra.mxu0 %v785
      %1384 = vmatpush.msra.mxu0 %v777
      %1385 = vmatpush.msra.mxu0 %v769
      %1386 = vmatpush.msra.mxu0 %v761
      %1387 = vmatpush.msra.mxu0 %v753
      %1388 = vmatpush.msra.mxu0 %v745
      %1389 = vmatpush.msra.mxu0 %v737
      %1390 = vmatpush.msra.mxu0 %v729
      %1391 = vmatpush.msra.mxu0 %v721
      %1392 = vmatpush.msra.mxu0 %v713
      %1393 = vmatpush.msra.mxu0 %v705
      %1394 = vmatpush.msra.mxu0 %v697
      %1395 = vmatpush.msra.mxu0 %v689
      %1396 = vmatpush.msra.mxu0 %v681
      %1397 = vmatpush.msra.mxu0 %v673
      %1398 = vmatmul.f32.gmra.mxu0 %v410
      %v1399 = vpop.f32.mrf.mxu0
      %v1400 = vadd.f32 %v1380, %v1399
      %1401 = vdwg.mxu0
      %1402 = vmatpush.msra.mxu0 %v921
      %1403 = vmatpush.msra.mxu0 %v913
      %1404 = vmatpush.msra.mxu0 %v905
      %1405 = vmatpush.msra.mxu0 %v897
      %1406 = vmatpush.msra.mxu0 %v889
      %1407 = vmatpush.msra.mxu0 %v881
      %1408 = vmatpush.msra.mxu0 %v873
      %1409 = vmatpush.msra.mxu0 %v865
      %1410 = vmatpush.msra.mxu0 %v857
      %1411 = vmatpush.msra.mxu0 %v849
      %1412 = vmatpush.msra.mxu0 %v841
      %1413 = vmatpush.msra.mxu0 %v833
      %1414 = vmatpush.msra.mxu0 %v825
      %1415 = vmatpush.msra.mxu0 %v817
      %1416 = vmatpush.msra.mxu0 %v809
      %1417 = vmatpush.msra.mxu0 %v801
      %1418 = vmatmul.f32.gmra.mxu0 %v411
      %v1419 = vpop.f32.mrf.mxu0
      %v1420 = vadd.f32 %v1400, %v1419
      %1421 = vdwg.mxu0
      %1422 = vmatpush.msra.mxu0 %v538
      %1423 = vmatpush.msra.mxu0 %v530
      %1424 = vmatpush.msra.mxu0 %v522
      %1425 = vmatpush.msra.mxu0 %v514
      %1426 = vmatpush.msra.mxu0 %v506
      %1427 = vmatpush.msra.mxu0 %v498
      %1428 = vmatpush.msra.mxu0 %v490
      %1429 = vmatpush.msra.mxu0 %v482
      %1430 = vmatpush.msra.mxu0 %v474
      %1431 = vmatpush.msra.mxu0 %v466
      %1432 = vmatpush.msra.mxu0 %v458
      %1433 = vmatpush.msra.mxu0 %v450
      %1434 = vmatpush.msra.mxu0 %v442
      %1435 = vmatpush.msra.mxu0 %v434
      %1436 = vmatpush.msra.mxu0 %v426
      %1437 = vmatpush.msra.mxu0 %v418
      %1438 = vmatmul.f32.gmra.mxu0 %v408
      %v1439 = vpop.f32.mrf.mxu0
      %v1440 = vadd.f32 %v932, %v1439
      %1441 = vdwg.mxu0
      %1442 = vmatpush.msra.mxu0 %v666
      %1443 = vmatpush.msra.mxu0 %v658
      %1444 = vmatpush.msra.mxu0 %v650
      %1445 = vmatpush.msra.mxu0 %v642
      %1446 = vmatpush.msra.mxu0 %v634
      %1447 = vmatpush.msra.mxu0 %v626
      %1448 = vmatpush.msra.mxu0 %v618
      %1449 = vmatpush.msra.mxu0 %v610
      %1450 = vmatpush.msra.mxu0 %v602
      %1451 = vmatpush.msra.mxu0 %v594
      %1452 = vmatpush.msra.mxu0 %v586
      %1453 = vmatpush.msra.mxu0 %v578
      %1454 = vmatpush.msra.mxu0 %v570
      %1455 = vmatpush.msra.mxu0 %v562
      %1456 = vmatpush.msra.mxu0 %v554
      %1457 = vmatpush.msra.mxu0 %v546
      %1458 = vmatmul.f32.gmra.mxu0 %v409
      %v1459 = vpop.f32.mrf.mxu0
      %v1460 = vadd.f32 %v1440, %v1459
      %1461 = vdwg.mxu0
      %1462 = vmatpush.msra.mxu0 %v794
      %1463 = vmatpush.msra.mxu0 %v786
      %1464 = vmatpush.msra.mxu0 %v778
      %1465 = vmatpush.msra.mxu0 %v770
      %1466 = vmatpush.msra.mxu0 %v762
      %1467 = vmatpush.msra.mxu0 %v754
      %1468 = vmatpush.msra.mxu0 %v746
      %1469 = vmatpush.msra.mxu0 %v738
      %1470 = vmatpush.msra.mxu0 %v730
      %1471 = vmatpush.msra.mxu0 %v722
      %1472 = vmatpush.msra.mxu0 %v714
      %1473 = vmatpush.msra.mxu0 %v706
      %1474 = vmatpush.msra.mxu0 %v698
      %1475 = vmatpush.msra.mxu0 %v690
      %1476 = vmatpush.msra.mxu0 %v682
      %1477 = vmatpush.msra.mxu0 %v674
      %1478 = vmatmul.f32.gmra.mxu0 %v410
      %v1479 = vpop.f32.mrf.mxu0
      %v1480 = vadd.f32 %v1460, %v1479
      %1481 = vdwg.mxu0
      %1482 = vmatpush.msra.mxu0 %v922
      %1483 = vmatpush.msra.mxu0 %v914
      %1484 = vmatpush.msra.mxu0 %v906
      %1485 = vmatpush.msra.mxu0 %v898
      %1486 = vmatpush.msra.mxu0 %v890
      %1487 = vmatpush.msra.mxu0 %v882
      %1488 = vmatpush.msra.mxu0 %v874
      %1489 = vmatpush.msra.mxu0 %v866
      %1490 = vmatpush.msra.mxu0 %v858
      %1491 = vmatpush.msra.mxu0 %v850
      %1492 = vmatpush.msra.mxu0 %v842
      %1493 = vmatpush.msra.mxu0 %v834
      %1494 = vmatpush.msra.mxu0 %v826
      %1495 = vmatpush.msra.mxu0 %v818
      %1496 = vmatpush.msra.mxu0 %v810
      %1497 = vmatpush.msra.mxu0 %v802
      %1498 = vmatmul.f32.gmra.mxu0 %v411
      %v1499 = vpop.f32.mrf.mxu0
      %v1500 = vadd.f32 %v1480, %v1499
      %1501 = vdwg.mxu0
      %1502 = vmatpush.msra.mxu0 %v539
      %1503 = vmatpush.msra.mxu0 %v531
      %1504 = vmatpush.msra.mxu0 %v523
      %1505 = vmatpush.msra.mxu0 %v515
      %1506 = vmatpush.msra.mxu0 %v507
      %1507 = vmatpush.msra.mxu0 %v499
      %1508 = vmatpush.msra.mxu0 %v491
      %1509 = vmatpush.msra.mxu0 %v483
      %1510 = vmatpush.msra.mxu0 %v475
      %1511 = vmatpush.msra.mxu0 %v467
      %1512 = vmatpush.msra.mxu0 %v459
      %1513 = vmatpush.msra.mxu0 %v451
      %1514 = vmatpush.msra.mxu0 %v443
      %1515 = vmatpush.msra.mxu0 %v435
      %1516 = vmatpush.msra.mxu0 %v427
      %1517 = vmatpush.msra.mxu0 %v419
      %1518 = vmatmul.f32.gmra.mxu0 %v408
      %v1519 = vpop.f32.mrf.mxu0
      %v1520 = vadd.f32 %v933, %v1519
      %1521 = vdwg.mxu0
      %1522 = vmatpush.msra.mxu0 %v667
      %1523 = vmatpush.msra.mxu0 %v659
      %1524 = vmatpush.msra.mxu0 %v651
      %1525 = vmatpush.msra.mxu0 %v643
      %1526 = vmatpush.msra.mxu0 %v635
      %1527 = vmatpush.msra.mxu0 %v627
      %1528 = vmatpush.msra.mxu0 %v619
      %1529 = vmatpush.msra.mxu0 %v611
      %1530 = vmatpush.msra.mxu0 %v603
      %1531 = vmatpush.msra.mxu0 %v595
      %1532 = vmatpush.msra.mxu0 %v587
      %1533 = vmatpush.msra.mxu0 %v579
      %1534 = vmatpush.msra.mxu0 %v571
      %1535 = vmatpush.msra.mxu0 %v563
      %1536 = vmatpush.msra.mxu0 %v555
      %1537 = vmatpush.msra.mxu0 %v547
      %1538 = vmatmul.f32.gmra.mxu0 %v409
      %v1539 = vpop.f32.mrf.mxu0
      %v1540 = vadd.f32 %v1520, %v1539
      %1541 = vdwg.mxu0
      %1542 = vmatpush.msra.mxu0 %v795
      %1543 = vmatpush.msra.mxu0 %v787
      %1544 = vmatpush.msra.mxu0 %v779
      %1545 = vmatpush.msra.mxu0 %v771
      %1546 = vmatpush.msra.mxu0 %v763
      %1547 = vmatpush.msra.mxu0 %v755
      %1548 = vmatpush.msra.mxu0 %v747
      %1549 = vmatpush.msra.mxu0 %v739
      %1550 = vmatpush.msra.mxu0 %v731
      %1551 = vmatpush.msra.mxu0 %v723
      %1552 = vmatpush.msra.mxu0 %v715
      %1553 = vmatpush.msra.mxu0 %v707
      %1554 = vmatpush.msra.mxu0 %v699
      %1555 = vmatpush.msra.mxu0 %v691
      %1556 = vmatpush.msra.mxu0 %v683
      %1557 = vmatpush.msra.mxu0 %v675
      %1558 = vmatmul.f32.gmra.mxu0 %v410
      %v1559 = vpop.f32.mrf.mxu0
      %v1560 = vadd.f32 %v1540, %v1559
      %1561 = vdwg.mxu0
      %1562 = vmatpush.msra.mxu0 %v923
      %1563 = vmatpush.msra.mxu0 %v915
      %1564 = vmatpush.msra.mxu0 %v907
      %1565 = vmatpush.msra.mxu0 %v899
      %1566 = vmatpush.msra.mxu0 %v891
      %1567 = vmatpush.msra.mxu0 %v883
      %1568 = vmatpush.msra.mxu0 %v875
      %1569 = vmatpush.msra.mxu0 %v867
      %1570 = vmatpush.msra.mxu0 %v859
      %1571 = vmatpush.msra.mxu0 %v851
      %1572 = vmatpush.msra.mxu0 %v843
      %1573 = vmatpush.msra.mxu0 %v835
      %1574 = vmatpush.msra.mxu0 %v827
      %1575 = vmatpush.msra.mxu0 %v819
      %1576 = vmatpush.msra.mxu0 %v811
      %1577 = vmatpush.msra.mxu0 %v803
      %1578 = vmatmul.f32.gmra.mxu0 %v411
      %v1579 = vpop.f32.mrf.mxu0
      %v1580 = vadd.f32 %v1560, %v1579
      %1581 = vdwg.mxu0
      %v1582 = vmax.f32 %v1020, 0.0
      %v1583 = vmax.f32 %v1100, 0.0
      %v1584 = vmax.f32 %v1180, 0.0
      %v1585 = vmax.f32 %v1260, 0.0
      %v1586 = vmax.f32 %v1340, 0.0
      %v1587 = vmax.f32 %v1420, 0.0
      %v1588 = vmax.f32 %v1500, 0.0
      %v1589 = vmax.f32 %v1580, 0.0
      %v1590 = vpack.c.bf16 %v1582, %v1582
      %v1591 = vpack.c.bf16 %v1583, %v1583
      %v1592 = vpack.c.bf16 %v1584, %v1584
      %v1593 = vpack.c.bf16 %v1585, %v1585
      %v1594 = vpack.c.bf16 %v1586, %v1586
      %v1595 = vpack.c.bf16 %v1587, %v1587
      %v1596 = vpack.c.bf16 %v1588, %v1588
      %v1597 = vpack.c.bf16 %v1589, %v1589
      %v1598 = vld [vmem:[%s3] sm:$0xff]
      %v1599 = vld [vmem:[%s3 + $0x8] sm:$0xff]
      %v1600 = vld [vmem:[%s3 + $0x10] sm:$0xff]
      %v1601 = vld [vmem:[%s3 + $0x18] sm:$0xff]
      %v1602 = vld [vmem:[%s3 + $0x20] sm:$0xff]
      %v1603 = vld [vmem:[%s3 + $0x28] sm:$0xff]
      %v1604 = vld [vmem:[%s3 + $0x30] sm:$0xff]
      %v1605 = vld [vmem:[%s3 + $0x38] sm:$0xff]
      %v1606 = vld [vmem:[%s3 + $0x40] sm:$0xff]
      %v1607 = vld [vmem:[%s3 + $0x48] sm:$0xff]
      %v1608 = vld [vmem:[%s3 + $0x50] sm:$0xff]
      %v1609 = vld [vmem:[%s3 + $0x58] sm:$0xff]
      %v1610 = vld [vmem:[%s3 + $0x60] sm:$0xff]
      %v1611 = vld [vmem:[%s3 + $0x68] sm:$0xff]
      %v1612 = vld [vmem:[%s3 + $0x70] sm:$0xff]
      %v1613 = vld [vmem:[%s3 + $0x78] sm:$0xff]
      %v1614 = vld [vmem:[%s3 + $0x80] sm:$0xff]
      %v1615 = vld [vmem:[%s3 + $0x88] sm:$0xff]
      %v1616 = vld [vmem:[%s3 + $0x90] sm:$0xff]
      %v1617 = vld [vmem:[%s3 + $0x98] sm:$0xff]
      %v1618 = vld [vmem:[%s3 + $0xa0] sm:$0xff]
      %v1619 = vld [vmem:[%s3 + $0xa8] sm:$0xff]
      %v1620 = vld [vmem:[%s3 + $0xb0] sm:$0xff]
      %v1621 = vld [vmem:[%s3 + $0xb8] sm:$0xff]
      %v1622 = vld [vmem:[%s3 + $0xc0] sm:$0xff]
      %v1623 = vld [vmem:[%s3 + $0xc8] sm:$0xff]
      %v1624 = vld [vmem:[%s3 + $0xd0] sm:$0xff]
      %v1625 = vld [vmem:[%s3 + $0xd8] sm:$0xff]
      %v1626 = vld [vmem:[%s3 + $0xe0] sm:$0xff]
      %v1627 = vld [vmem:[%s3 + $0xe8] sm:$0xff]
      %v1628 = vld [vmem:[%s3 + $0xf0] sm:$0xff]
      %v1629 = vld [vmem:[%s3 + $0xf8] sm:$0xff]
      %v1630 = vld [vmem:[%s3 + $0x100] sm:$0xff]
      %v1631 = vld [vmem:[%s3 + $0x108] sm:$0xff]
      %v1632 = vld [vmem:[%s3 + $0x110] sm:$0xff]
      %v1633 = vld [vmem:[%s3 + $0x118] sm:$0xff]
      %v1634 = vld [vmem:[%s3 + $0x120] sm:$0xff]
      %v1635 = vld [vmem:[%s3 + $0x128] sm:$0xff]
      %v1636 = vld [vmem:[%s3 + $0x130] sm:$0xff]
      %v1637 = vld [vmem:[%s3 + $0x138] sm:$0xff]
      %v1638 = vld [vmem:[%s3 + $0x140] sm:$0xff]
      %v1639 = vld [vmem:[%s3 + $0x148] sm:$0xff]
      %v1640 = vld [vmem:[%s3 + $0x150] sm:$0xff]
      %v1641 = vld [vmem:[%s3 + $0x158] sm:$0xff]
      %v1642 = vld [vmem:[%s3 + $0x160] sm:$0xff]
      %v1643 = vld [vmem:[%s3 + $0x168] sm:$0xff]
      %v1644 = vld [vmem:[%s3 + $0x170] sm:$0xff]
      %v1645 = vld [vmem:[%s3 + $0x178] sm:$0xff]
      %v1646 = vld [vmem:[%s3 + $0x180] sm:$0xff]
      %v1647 = vld [vmem:[%s3 + $0x188] sm:$0xff]
      %v1648 = vld [vmem:[%s3 + $0x190] sm:$0xff]
      %v1649 = vld [vmem:[%s3 + $0x198] sm:$0xff]
      %v1650 = vld [vmem:[%s3 + $0x1a0] sm:$0xff]
      %v1651 = vld [vmem:[%s3 + $0x1a8] sm:$0xff]
      %v1652 = vld [vmem:[%s3 + $0x1b0] sm:$0xff]
      %v1653 = vld [vmem:[%s3 + $0x1b8] sm:$0xff]
      %v1654 = vld [vmem:[%s3 + $0x1c0] sm:$0xff]
      %v1655 = vld [vmem:[%s3 + $0x1c8] sm:$0xff]
      %v1656 = vld [vmem:[%s3 + $0x1d0] sm:$0xff]
      %v1657 = vld [vmem:[%s3 + $0x1d8] sm:$0xff]
      %v1658 = vld [vmem:[%s3 + $0x1e0] sm:$0xff]
      %v1659 = vld [vmem:[%s3 + $0x1e8] sm:$0xff]
      %v1660 = vld [vmem:[%s3 + $0x1f0] sm:$0xff]
      %v1661 = vld [vmem:[%s3 + $0x1f8] sm:$0xff]
      %v1662 = vld [vmem:[%s3 + $0x200] sm:$0xff]
      %v1663 = vld [vmem:[%s3 + $0x208] sm:$0xff]
      %v1664 = vld [vmem:[%s3 + $0x210] sm:$0xff]
      %v1665 = vld [vmem:[%s3 + $0x218] sm:$0xff]
      %v1666 = vld [vmem:[%s3 + $0x220] sm:$0xff]
      %v1667 = vld [vmem:[%s3 + $0x228] sm:$0xff]
      %v1668 = vld [vmem:[%s3 + $0x230] sm:$0xff]
      %v1669 = vld [vmem:[%s3 + $0x238] sm:$0xff]
      %v1670 = vld [vmem:[%s3 + $0x240] sm:$0xff]
      %v1671 = vld [vmem:[%s3 + $0x248] sm:$0xff]
      %v1672 = vld [vmem:[%s3 + $0x250] sm:$0xff]
      %v1673 = vld [vmem:[%s3 + $0x258] sm:$0xff]
      %v1674 = vld [vmem:[%s3 + $0x260] sm:$0xff]
      %v1675 = vld [vmem:[%s3 + $0x268] sm:$0xff]
      %v1676 = vld [vmem:[%s3 + $0x270] sm:$0xff]
      %v1677 = vld [vmem:[%s3 + $0x278] sm:$0xff]
      %v1678 = vld [vmem:[%s3 + $0x280] sm:$0xff]
      %v1679 = vld [vmem:[%s3 + $0x288] sm:$0xff]
      %v1680 = vld [vmem:[%s3 + $0x290] sm:$0xff]
      %v1681 = vld [vmem:[%s3 + $0x298] sm:$0xff]
      %v1682 = vld [vmem:[%s3 + $0x2a0] sm:$0xff]
      %v1683 = vld [vmem:[%s3 + $0x2a8] sm:$0xff]
      %v1684 = vld [vmem:[%s3 + $0x2b0] sm:$0xff]
      %v1685 = vld [vmem:[%s3 + $0x2b8] sm:$0xff]
      %v1686 = vld [vmem:[%s3 + $0x2c0] sm:$0xff]
      %v1687 = vld [vmem:[%s3 + $0x2c8] sm:$0xff]
      %v1688 = vld [vmem:[%s3 + $0x2d0] sm:$0xff]
      %v1689 = vld [vmem:[%s3 + $0x2d8] sm:$0xff]
      %v1690 = vld [vmem:[%s3 + $0x2e0] sm:$0xff]
      %v1691 = vld [vmem:[%s3 + $0x2e8] sm:$0xff]
      %v1692 = vld [vmem:[%s3 + $0x2f0] sm:$0xff]
      %v1693 = vld [vmem:[%s3 + $0x2f8] sm:$0xff]
      %v1694 = vld [vmem:[%s3 + $0x300] sm:$0xff]
      %v1695 = vld [vmem:[%s3 + $0x308] sm:$0xff]
      %v1696 = vld [vmem:[%s3 + $0x310] sm:$0xff]
      %v1697 = vld [vmem:[%s3 + $0x318] sm:$0xff]
      %v1698 = vld [vmem:[%s3 + $0x320] sm:$0xff]
      %v1699 = vld [vmem:[%s3 + $0x328] sm:$0xff]
      %v1700 = vld [vmem:[%s3 + $0x330] sm:$0xff]
      %v1701 = vld [vmem:[%s3 + $0x338] sm:$0xff]
      %v1702 = vld [vmem:[%s3 + $0x340] sm:$0xff]
      %v1703 = vld [vmem:[%s3 + $0x348] sm:$0xff]
      %v1704 = vld [vmem:[%s3 + $0x350] sm:$0xff]
      %v1705 = vld [vmem:[%s3 + $0x358] sm:$0xff]
      %v1706 = vld [vmem:[%s3 + $0x360] sm:$0xff]
      %v1707 = vld [vmem:[%s3 + $0x368] sm:$0xff]
      %v1708 = vld [vmem:[%s3 + $0x370] sm:$0xff]
      %v1709 = vld [vmem:[%s3 + $0x378] sm:$0xff]
      %v1710 = vld [vmem:[%s3 + $0x380] sm:$0xff]
      %v1711 = vld [vmem:[%s3 + $0x388] sm:$0xff]
      %v1712 = vld [vmem:[%s3 + $0x390] sm:$0xff]
      %v1713 = vld [vmem:[%s3 + $0x398] sm:$0xff]
      %v1714 = vld [vmem:[%s3 + $0x3a0] sm:$0xff]
      %v1715 = vld [vmem:[%s3 + $0x3a8] sm:$0xff]
      %v1716 = vld [vmem:[%s3 + $0x3b0] sm:$0xff]
      %v1717 = vld [vmem:[%s3 + $0x3b8] sm:$0xff]
      %v1718 = vld [vmem:[%s3 + $0x3c0] sm:$0xff]
      %v1719 = vld [vmem:[%s3 + $0x3c8] sm:$0xff]
      %v1720 = vld [vmem:[%s3 + $0x3d0] sm:$0xff]
      %v1721 = vld [vmem:[%s3 + $0x3d8] sm:$0xff]
      %v1722 = vld [vmem:[%s3 + $0x3e0] sm:$0xff]
      %v1723 = vld [vmem:[%s3 + $0x3e8] sm:$0xff]
      %v1724 = vld [vmem:[%s3 + $0x3f0] sm:$0xff]
      %v1725 = vld [vmem:[%s3 + $0x3f8] sm:$0xff]
      %v1726 = vld [vmem:[#allocation9] sm:$0x3]
      %v1728 = vperm.slane %v1726, 0
      %v1729 = vperm.slane %v1726, 1
      %v1860 = vunpack.c.l.b16 %v1598
      %v1861 = vunpack.c.h.b16 %v1598
      %v1862 = vunpack.c.l.b16 %v1599
      %v1863 = vunpack.c.h.b16 %v1599
      %v1864 = vunpack.c.l.b16 %v1600
      %v1865 = vunpack.c.h.b16 %v1600
      %v1866 = vunpack.c.l.b16 %v1601
      %v1867 = vunpack.c.h.b16 %v1601
      %v1868 = vunpack.c.l.b16 %v1602
      %v1869 = vunpack.c.h.b16 %v1602
      %v1870 = vunpack.c.l.b16 %v1603
      %v1871 = vunpack.c.h.b16 %v1603
      %v1872 = vunpack.c.l.b16 %v1604
      %v1873 = vunpack.c.h.b16 %v1604
      %v1874 = vunpack.c.l.b16 %v1605
      %v1875 = vunpack.c.h.b16 %v1605
      %v1876 = vunpack.c.l.b16 %v1606
      %v1877 = vunpack.c.h.b16 %v1606
      %v1878 = vunpack.c.l.b16 %v1607
      %v1879 = vunpack.c.h.b16 %v1607
      %v1880 = vunpack.c.l.b16 %v1608
      %v1881 = vunpack.c.h.b16 %v1608
      %v1882 = vunpack.c.l.b16 %v1609
      %v1883 = vunpack.c.h.b16 %v1609
      %v1884 = vunpack.c.l.b16 %v1610
      %v1885 = vunpack.c.h.b16 %v1610
      %v1886 = vunpack.c.l.b16 %v1611
      %v1887 = vunpack.c.h.b16 %v1611
      %v1888 = vunpack.c.l.b16 %v1612
      %v1889 = vunpack.c.h.b16 %v1612
      %v1890 = vunpack.c.l.b16 %v1613
      %v1891 = vunpack.c.h.b16 %v1613
      %v1892 = vunpack.c.l.b16 %v1614
      %v1893 = vunpack.c.h.b16 %v1614
      %v1894 = vunpack.c.l.b16 %v1615
      %v1895 = vunpack.c.h.b16 %v1615
      %v1896 = vunpack.c.l.b16 %v1616
      %v1897 = vunpack.c.h.b16 %v1616
      %v1898 = vunpack.c.l.b16 %v1617
      %v1899 = vunpack.c.h.b16 %v1617
      %v1900 = vunpack.c.l.b16 %v1618
      %v1901 = vunpack.c.h.b16 %v1618
      %v1902 = vunpack.c.l.b16 %v1619
      %v1903 = vunpack.c.h.b16 %v1619
      %v1904 = vunpack.c.l.b16 %v1620
      %v1905 = vunpack.c.h.b16 %v1620
      %v1906 = vunpack.c.l.b16 %v1621
      %v1907 = vunpack.c.h.b16 %v1621
      %v1908 = vunpack.c.l.b16 %v1622
      %v1909 = vunpack.c.h.b16 %v1622
      %v1910 = vunpack.c.l.b16 %v1623
      %v1911 = vunpack.c.h.b16 %v1623
      %v1912 = vunpack.c.l.b16 %v1624
      %v1913 = vunpack.c.h.b16 %v1624
      %v1914 = vunpack.c.l.b16 %v1625
      %v1915 = vunpack.c.h.b16 %v1625
      %v1916 = vunpack.c.l.b16 %v1626
      %v1917 = vunpack.c.h.b16 %v1626
      %v1918 = vunpack.c.l.b16 %v1627
      %v1919 = vunpack.c.h.b16 %v1627
      %v1920 = vunpack.c.l.b16 %v1628
      %v1921 = vunpack.c.h.b16 %v1628
      %v1922 = vunpack.c.l.b16 %v1629
      %v1923 = vunpack.c.h.b16 %v1629
      %v1924 = vunpack.c.l.b16 %v1630
      %v1925 = vunpack.c.h.b16 %v1630
      %v1926 = vunpack.c.l.b16 %v1631
      %v1927 = vunpack.c.h.b16 %v1631
      %v1928 = vunpack.c.l.b16 %v1632
      %v1929 = vunpack.c.h.b16 %v1632
      %v1930 = vunpack.c.l.b16 %v1633
      %v1931 = vunpack.c.h.b16 %v1633
      %v1932 = vunpack.c.l.b16 %v1634
      %v1933 = vunpack.c.h.b16 %v1634
      %v1934 = vunpack.c.l.b16 %v1635
      %v1935 = vunpack.c.h.b16 %v1635
      %v1936 = vunpack.c.l.b16 %v1636
      %v1937 = vunpack.c.h.b16 %v1636
      %v1938 = vunpack.c.l.b16 %v1637
      %v1939 = vunpack.c.h.b16 %v1637
      %v1940 = vunpack.c.l.b16 %v1638
      %v1941 = vunpack.c.h.b16 %v1638
      %v1942 = vunpack.c.l.b16 %v1639
      %v1943 = vunpack.c.h.b16 %v1639
      %v1944 = vunpack.c.l.b16 %v1640
      %v1945 = vunpack.c.h.b16 %v1640
      %v1946 = vunpack.c.l.b16 %v1641
      %v1947 = vunpack.c.h.b16 %v1641
      %v1948 = vunpack.c.l.b16 %v1642
      %v1949 = vunpack.c.h.b16 %v1642
      %v1950 = vunpack.c.l.b16 %v1643
      %v1951 = vunpack.c.h.b16 %v1643
      %v1952 = vunpack.c.l.b16 %v1644
      %v1953 = vunpack.c.h.b16 %v1644
      %v1954 = vunpack.c.l.b16 %v1645
      %v1955 = vunpack.c.h.b16 %v1645
      %v1956 = vunpack.c.l.b16 %v1646
      %v1957 = vunpack.c.h.b16 %v1646
      %v1958 = vunpack.c.l.b16 %v1647
      %v1959 = vunpack.c.h.b16 %v1647
      %v1960 = vunpack.c.l.b16 %v1648
      %v1961 = vunpack.c.h.b16 %v1648
      %v1962 = vunpack.c.l.b16 %v1649
      %v1963 = vunpack.c.h.b16 %v1649
      %v1964 = vunpack.c.l.b16 %v1650
      %v1965 = vunpack.c.h.b16 %v1650
      %v1966 = vunpack.c.l.b16 %v1651
      %v1967 = vunpack.c.h.b16 %v1651
      %v1968 = vunpack.c.l.b16 %v1652
      %v1969 = vunpack.c.h.b16 %v1652
      %v1970 = vunpack.c.l.b16 %v1653
      %v1971 = vunpack.c.h.b16 %v1653
      %v1972 = vunpack.c.l.b16 %v1654
      %v1973 = vunpack.c.h.b16 %v1654
      %v1974 = vunpack.c.l.b16 %v1655
      %v1975 = vunpack.c.h.b16 %v1655
      %v1976 = vunpack.c.l.b16 %v1656
      %v1977 = vunpack.c.h.b16 %v1656
      %v1978 = vunpack.c.l.b16 %v1657
      %v1979 = vunpack.c.h.b16 %v1657
      %v1980 = vunpack.c.l.b16 %v1658
      %v1981 = vunpack.c.h.b16 %v1658
      %v1982 = vunpack.c.l.b16 %v1659
      %v1983 = vunpack.c.h.b16 %v1659
      %v1984 = vunpack.c.l.b16 %v1660
      %v1985 = vunpack.c.h.b16 %v1660
      %v1986 = vunpack.c.l.b16 %v1661
      %v1987 = vunpack.c.h.b16 %v1661
      %v1988 = vunpack.c.l.b16 %v1662
      %v1989 = vunpack.c.h.b16 %v1662
      %v1990 = vunpack.c.l.b16 %v1663
      %v1991 = vunpack.c.h.b16 %v1663
      %v1992 = vunpack.c.l.b16 %v1664
      %v1993 = vunpack.c.h.b16 %v1664
      %v1994 = vunpack.c.l.b16 %v1665
      %v1995 = vunpack.c.h.b16 %v1665
      %v1996 = vunpack.c.l.b16 %v1666
      %v1997 = vunpack.c.h.b16 %v1666
      %v1998 = vunpack.c.l.b16 %v1667
      %v1999 = vunpack.c.h.b16 %v1667
      %v2000 = vunpack.c.l.b16 %v1668
      %v2001 = vunpack.c.h.b16 %v1668
      %v2002 = vunpack.c.l.b16 %v1669
      %v2003 = vunpack.c.h.b16 %v1669
      %v2004 = vunpack.c.l.b16 %v1670
      %v2005 = vunpack.c.h.b16 %v1670
      %v2006 = vunpack.c.l.b16 %v1671
      %v2007 = vunpack.c.h.b16 %v1671
      %v2008 = vunpack.c.l.b16 %v1672
      %v2009 = vunpack.c.h.b16 %v1672
      %v2010 = vunpack.c.l.b16 %v1673
      %v2011 = vunpack.c.h.b16 %v1673
      %v2012 = vunpack.c.l.b16 %v1674
      %v2013 = vunpack.c.h.b16 %v1674
      %v2014 = vunpack.c.l.b16 %v1675
      %v2015 = vunpack.c.h.b16 %v1675
      %v2016 = vunpack.c.l.b16 %v1676
      %v2017 = vunpack.c.h.b16 %v1676
      %v2018 = vunpack.c.l.b16 %v1677
      %v2019 = vunpack.c.h.b16 %v1677
      %v2020 = vunpack.c.l.b16 %v1678
      %v2021 = vunpack.c.h.b16 %v1678
      %v2022 = vunpack.c.l.b16 %v1679
      %v2023 = vunpack.c.h.b16 %v1679
      %v2024 = vunpack.c.l.b16 %v1680
      %v2025 = vunpack.c.h.b16 %v1680
      %v2026 = vunpack.c.l.b16 %v1681
      %v2027 = vunpack.c.h.b16 %v1681
      %v2028 = vunpack.c.l.b16 %v1682
      %v2029 = vunpack.c.h.b16 %v1682
      %v2030 = vunpack.c.l.b16 %v1683
      %v2031 = vunpack.c.h.b16 %v1683
      %v2032 = vunpack.c.l.b16 %v1684
      %v2033 = vunpack.c.h.b16 %v1684
      %v2034 = vunpack.c.l.b16 %v1685
      %v2035 = vunpack.c.h.b16 %v1685
      %v2036 = vunpack.c.l.b16 %v1686
      %v2037 = vunpack.c.h.b16 %v1686
      %v2038 = vunpack.c.l.b16 %v1687
      %v2039 = vunpack.c.h.b16 %v1687
      %v2040 = vunpack.c.l.b16 %v1688
      %v2041 = vunpack.c.h.b16 %v1688
      %v2042 = vunpack.c.l.b16 %v1689
      %v2043 = vunpack.c.h.b16 %v1689
      %v2044 = vunpack.c.l.b16 %v1690
      %v2045 = vunpack.c.h.b16 %v1690
      %v2046 = vunpack.c.l.b16 %v1691
      %v2047 = vunpack.c.h.b16 %v1691
      %v2048 = vunpack.c.l.b16 %v1692
      %v2049 = vunpack.c.h.b16 %v1692
      %v2050 = vunpack.c.l.b16 %v1693
      %v2051 = vunpack.c.h.b16 %v1693
      %v2052 = vunpack.c.l.b16 %v1694
      %v2053 = vunpack.c.h.b16 %v1694
      %v2054 = vunpack.c.l.b16 %v1695
      %v2055 = vunpack.c.h.b16 %v1695
      %v2056 = vunpack.c.l.b16 %v1696
      %v2057 = vunpack.c.h.b16 %v1696
      %v2058 = vunpack.c.l.b16 %v1697
      %v2059 = vunpack.c.h.b16 %v1697
      %v2060 = vunpack.c.l.b16 %v1698
      %v2061 = vunpack.c.h.b16 %v1698
      %v2062 = vunpack.c.l.b16 %v1699
      %v2063 = vunpack.c.h.b16 %v1699
      %v2064 = vunpack.c.l.b16 %v1700
      %v2065 = vunpack.c.h.b16 %v1700
      %v2066 = vunpack.c.l.b16 %v1701
      %v2067 = vunpack.c.h.b16 %v1701
      %v2068 = vunpack.c.l.b16 %v1702
      %v2069 = vunpack.c.h.b16 %v1702
      %v2070 = vunpack.c.l.b16 %v1703
      %v2071 = vunpack.c.h.b16 %v1703
      %v2072 = vunpack.c.l.b16 %v1704
      %v2073 = vunpack.c.h.b16 %v1704
      %v2074 = vunpack.c.l.b16 %v1705
      %v2075 = vunpack.c.h.b16 %v1705
      %v2076 = vunpack.c.l.b16 %v1706
      %v2077 = vunpack.c.h.b16 %v1706
      %v2078 = vunpack.c.l.b16 %v1707
      %v2079 = vunpack.c.h.b16 %v1707
      %v2080 = vunpack.c.l.b16 %v1708
      %v2081 = vunpack.c.h.b16 %v1708
      %v2082 = vunpack.c.l.b16 %v1709
      %v2083 = vunpack.c.h.b16 %v1709
      %v2084 = vunpack.c.l.b16 %v1710
      %v2085 = vunpack.c.h.b16 %v1710
      %v2086 = vunpack.c.l.b16 %v1711
      %v2087 = vunpack.c.h.b16 %v1711
      %v2088 = vunpack.c.l.b16 %v1712
      %v2089 = vunpack.c.h.b16 %v1712
      %v2090 = vunpack.c.l.b16 %v1713
      %v2091 = vunpack.c.h.b16 %v1713
      %v2092 = vunpack.c.l.b16 %v1714
      %v2093 = vunpack.c.h.b16 %v1714
      %v2094 = vunpack.c.l.b16 %v1715
      %v2095 = vunpack.c.h.b16 %v1715
      %v2096 = vunpack.c.l.b16 %v1716
      %v2097 = vunpack.c.h.b16 %v1716
      %v2098 = vunpack.c.l.b16 %v1717
      %v2099 = vunpack.c.h.b16 %v1717
      %v2100 = vunpack.c.l.b16 %v1718
      %v2101 = vunpack.c.h.b16 %v1718
      %v2102 = vunpack.c.l.b16 %v1719
      %v2103 = vunpack.c.h.b16 %v1719
      %v2104 = vunpack.c.l.b16 %v1720
      %v2105 = vunpack.c.h.b16 %v1720
      %v2106 = vunpack.c.l.b16 %v1721
      %v2107 = vunpack.c.h.b16 %v1721
      %v2108 = vunpack.c.l.b16 %v1722
      %v2109 = vunpack.c.h.b16 %v1722
      %v2110 = vunpack.c.l.b16 %v1723
      %v2111 = vunpack.c.h.b16 %v1723
      %v2112 = vunpack.c.l.b16 %v1724
      %v2113 = vunpack.c.h.b16 %v1724
      %v2114 = vunpack.c.l.b16 %v1725
      %v2115 = vunpack.c.h.b16 %v1725
      %v2116 = vpack.c.b16 %v1862, %v1860
      %v2117 = vpack.c.b16 %v1863, %v1861
      %v2118 = vpack.c.b16 %v1866, %v1864
      %v2119 = vpack.c.b16 %v1867, %v1865
      %v2120 = vpack.c.b16 %v1870, %v1868
      %v2121 = vpack.c.b16 %v1871, %v1869
      %v2122 = vpack.c.b16 %v1874, %v1872
      %v2123 = vpack.c.b16 %v1875, %v1873
      %v2124 = vpack.c.b16 %v1878, %v1876
      %v2125 = vpack.c.b16 %v1879, %v1877
      %v2126 = vpack.c.b16 %v1882, %v1880
      %v2127 = vpack.c.b16 %v1883, %v1881
      %v2128 = vpack.c.b16 %v1886, %v1884
      %v2129 = vpack.c.b16 %v1887, %v1885
      %v2130 = vpack.c.b16 %v1890, %v1888
      %v2131 = vpack.c.b16 %v1891, %v1889
      %v2132 = vpack.c.b16 %v1894, %v1892
      %v2133 = vpack.c.b16 %v1895, %v1893
      %v2134 = vpack.c.b16 %v1898, %v1896
      %v2135 = vpack.c.b16 %v1899, %v1897
      %v2136 = vpack.c.b16 %v1902, %v1900
      %v2137 = vpack.c.b16 %v1903, %v1901
      %v2138 = vpack.c.b16 %v1906, %v1904
      %v2139 = vpack.c.b16 %v1907, %v1905
      %v2140 = vpack.c.b16 %v1910, %v1908
      %v2141 = vpack.c.b16 %v1911, %v1909
      %v2142 = vpack.c.b16 %v1914, %v1912
      %v2143 = vpack.c.b16 %v1915, %v1913
      %v2144 = vpack.c.b16 %v1918, %v1916
      %v2145 = vpack.c.b16 %v1919, %v1917
      %v2146 = vpack.c.b16 %v1922, %v1920
      %v2147 = vpack.c.b16 %v1923, %v1921
      %v2148 = vpack.c.b16 %v1926, %v1924
      %v2149 = vpack.c.b16 %v1927, %v1925
      %v2150 = vpack.c.b16 %v1930, %v1928
      %v2151 = vpack.c.b16 %v1931, %v1929
      %v2152 = vpack.c.b16 %v1934, %v1932
      %v2153 = vpack.c.b16 %v1935, %v1933
      %v2154 = vpack.c.b16 %v1938, %v1936
      %v2155 = vpack.c.b16 %v1939, %v1937
      %v2156 = vpack.c.b16 %v1942, %v1940
      %v2157 = vpack.c.b16 %v1943, %v1941
      %v2158 = vpack.c.b16 %v1946, %v1944
      %v2159 = vpack.c.b16 %v1947, %v1945
      %v2160 = vpack.c.b16 %v1950, %v1948
      %v2161 = vpack.c.b16 %v1951, %v1949
      %v2162 = vpack.c.b16 %v1954, %v1952
      %v2163 = vpack.c.b16 %v1955, %v1953
      %v2164 = vpack.c.b16 %v1958, %v1956
      %v2165 = vpack.c.b16 %v1959, %v1957
      %v2166 = vpack.c.b16 %v1962, %v1960
      %v2167 = vpack.c.b16 %v1963, %v1961
      %v2168 = vpack.c.b16 %v1966, %v1964
      %v2169 = vpack.c.b16 %v1967, %v1965
      %v2170 = vpack.c.b16 %v1970, %v1968
      %v2171 = vpack.c.b16 %v1971, %v1969
      %v2172 = vpack.c.b16 %v1974, %v1972
      %v2173 = vpack.c.b16 %v1975, %v1973
      %v2174 = vpack.c.b16 %v1978, %v1976
      %v2175 = vpack.c.b16 %v1979, %v1977
      %v2176 = vpack.c.b16 %v1982, %v1980
      %v2177 = vpack.c.b16 %v1983, %v1981
      %v2178 = vpack.c.b16 %v1986, %v1984
      %v2179 = vpack.c.b16 %v1987, %v1985
      %v2180 = vpack.c.b16 %v1990, %v1988
      %v2181 = vpack.c.b16 %v1991, %v1989
      %v2182 = vpack.c.b16 %v1994, %v1992
      %v2183 = vpack.c.b16 %v1995, %v1993
      %v2184 = vpack.c.b16 %v1998, %v1996
      %v2185 = vpack.c.b16 %v1999, %v1997
      %v2186 = vpack.c.b16 %v2002, %v2000
      %v2187 = vpack.c.b16 %v2003, %v2001
      %v2188 = vpack.c.b16 %v2006, %v2004
      %v2189 = vpack.c.b16 %v2007, %v2005
      %v2190 = vpack.c.b16 %v2010, %v2008
      %v2191 = vpack.c.b16 %v2011, %v2009
      %v2192 = vpack.c.b16 %v2014, %v2012
      %v2193 = vpack.c.b16 %v2015, %v2013
      %v2194 = vpack.c.b16 %v2018, %v2016
      %v2195 = vpack.c.b16 %v2019, %v2017
      %v2196 = vpack.c.b16 %v2022, %v2020
      %v2197 = vpack.c.b16 %v2023, %v2021
      %v2198 = vpack.c.b16 %v2026, %v2024
      %v2199 = vpack.c.b16 %v2027, %v2025
      %v2200 = vpack.c.b16 %v2030, %v2028
      %v2201 = vpack.c.b16 %v2031, %v2029
      %v2202 = vpack.c.b16 %v2034, %v2032
      %v2203 = vpack.c.b16 %v2035, %v2033
      %v2204 = vpack.c.b16 %v2038, %v2036
      %v2205 = vpack.c.b16 %v2039, %v2037
      %v2206 = vpack.c.b16 %v2042, %v2040
      %v2207 = vpack.c.b16 %v2043, %v2041
      %v2208 = vpack.c.b16 %v2046, %v2044
      %v2209 = vpack.c.b16 %v2047, %v2045
      %v2210 = vpack.c.b16 %v2050, %v2048
      %v2211 = vpack.c.b16 %v2051, %v2049
      %v2212 = vpack.c.b16 %v2054, %v2052
      %v2213 = vpack.c.b16 %v2055, %v2053
      %v2214 = vpack.c.b16 %v2058, %v2056
      %v2215 = vpack.c.b16 %v2059, %v2057
      %v2216 = vpack.c.b16 %v2062, %v2060
      %v2217 = vpack.c.b16 %v2063, %v2061
      %v2218 = vpack.c.b16 %v2066, %v2064
      %v2219 = vpack.c.b16 %v2067, %v2065
      %v2220 = vpack.c.b16 %v2070, %v2068
      %v2221 = vpack.c.b16 %v2071, %v2069
      %v2222 = vpack.c.b16 %v2074, %v2072
      %v2223 = vpack.c.b16 %v2075, %v2073
      %v2224 = vpack.c.b16 %v2078, %v2076
      %v2225 = vpack.c.b16 %v2079, %v2077
      %v2226 = vpack.c.b16 %v2082, %v2080
      %v2227 = vpack.c.b16 %v2083, %v2081
      %v2228 = vpack.c.b16 %v2086, %v2084
      %v2229 = vpack.c.b16 %v2087, %v2085
      %v2230 = vpack.c.b16 %v2090, %v2088
      %v2231 = vpack.c.b16 %v2091, %v2089
      %v2232 = vpack.c.b16 %v2094, %v2092
      %v2233 = vpack.c.b16 %v2095, %v2093
      %v2234 = vpack.c.b16 %v2098, %v2096
      %v2235 = vpack.c.b16 %v2099, %v2097
      %v2236 = vpack.c.b16 %v2102, %v2100
      %v2237 = vpack.c.b16 %v2103, %v2101
      %v2238 = vpack.c.b16 %v2106, %v2104
      %v2239 = vpack.c.b16 %v2107, %v2105
      %v2240 = vpack.c.b16 %v2110, %v2108
      %v2241 = vpack.c.b16 %v2111, %v2109
      %v2242 = vpack.c.b16 %v2114, %v2112
      %v2243 = vpack.c.b16 %v2115, %v2113
      %2372 = vmatpush.bf16.msra.mxu0 %v2130
      %2373 = vmatpush.bf16.msra.mxu0 %v2128
      %2374 = vmatpush.bf16.msra.mxu0 %v2126
      %2375 = vmatpush.bf16.msra.mxu0 %v2124
      %2376 = vmatpush.bf16.msra.mxu0 %v2122
      %2377 = vmatpush.bf16.msra.mxu0 %v2120
      %2378 = vmatpush.bf16.msra.mxu0 %v2118
      %2379 = vmatpush.bf16.msra.mxu0 %v2116
      %2380 = vmatmul.bf16.gmra.mxu0 %v1590
      %v2381 = vpop.f32.mrf.mxu0
      %v2382 = vadd.f32 %v1728, %v2381
      %v2383 = vpop.f32.mrf.mxu0
      %2384 = vdwg.mxu0
      %2385 = vmatpush.bf16.msra.mxu0 %v2146
      %2386 = vmatpush.bf16.msra.mxu0 %v2144
      %2387 = vmatpush.bf16.msra.mxu0 %v2142
      %2388 = vmatpush.bf16.msra.mxu0 %v2140
      %2389 = vmatpush.bf16.msra.mxu0 %v2138
      %2390 = vmatpush.bf16.msra.mxu0 %v2136
      %2391 = vmatpush.bf16.msra.mxu0 %v2134
      %2392 = vmatpush.bf16.msra.mxu0 %v2132
      %2393 = vmatmul.bf16.gmra.mxu0 %v1591
      %v2394 = vpop.f32.mrf.mxu0
      %v2395 = vadd.f32 %v2382, %v2394
      %v2396 = vpop.f32.mrf.mxu0
      %2397 = vdwg.mxu0
      %2398 = vmatpush.bf16.msra.mxu0 %v2162
      %2399 = vmatpush.bf16.msra.mxu0 %v2160
      %2400 = vmatpush.bf16.msra.mxu0 %v2158
      %2401 = vmatpush.bf16.msra.mxu0 %v2156
      %2402 = vmatpush.bf16.msra.mxu0 %v2154
      %2403 = vmatpush.bf16.msra.mxu0 %v2152
      %2404 = vmatpush.bf16.msra.mxu0 %v2150
      %2405 = vmatpush.bf16.msra.mxu0 %v2148
      %2406 = vmatmul.bf16.gmra.mxu0 %v1592
      %v2407 = vpop.f32.mrf.mxu0
      %v2408 = vadd.f32 %v2395, %v2407
      %v2409 = vpop.f32.mrf.mxu0
      %2410 = vdwg.mxu0
      %2411 = vmatpush.bf16.msra.mxu0 %v2178
      %2412 = vmatpush.bf16.msra.mxu0 %v2176
      %2413 = vmatpush.bf16.msra.mxu0 %v2174
      %2414 = vmatpush.bf16.msra.mxu0 %v2172
      %2415 = vmatpush.bf16.msra.mxu0 %v2170
      %2416 = vmatpush.bf16.msra.mxu0 %v2168
      %2417 = vmatpush.bf16.msra.mxu0 %v2166
      %2418 = vmatpush.bf16.msra.mxu0 %v2164
      %2419 = vmatmul.bf16.gmra.mxu0 %v1593
      %v2420 = vpop.f32.mrf.mxu0
      %v2421 = vadd.f32 %v2408, %v2420
      %v2422 = vpop.f32.mrf.mxu0
      %2423 = vdwg.mxu0
      %2424 = vmatpush.bf16.msra.mxu0 %v2194
      %2425 = vmatpush.bf16.msra.mxu0 %v2192
      %2426 = vmatpush.bf16.msra.mxu0 %v2190
      %2427 = vmatpush.bf16.msra.mxu0 %v2188
      %2428 = vmatpush.bf16.msra.mxu0 %v2186
      %2429 = vmatpush.bf16.msra.mxu0 %v2184
      %2430 = vmatpush.bf16.msra.mxu0 %v2182
      %2431 = vmatpush.bf16.msra.mxu0 %v2180
      %2432 = vmatmul.bf16.gmra.mxu0 %v1594
      %v2433 = vpop.f32.mrf.mxu0
      %v2434 = vadd.f32 %v2421, %v2433
      %v2435 = vpop.f32.mrf.mxu0
      %2436 = vdwg.mxu0
      %2437 = vmatpush.bf16.msra.mxu0 %v2210
      %2438 = vmatpush.bf16.msra.mxu0 %v2208
      %2439 = vmatpush.bf16.msra.mxu0 %v2206
      %2440 = vmatpush.bf16.msra.mxu0 %v2204
      %2441 = vmatpush.bf16.msra.mxu0 %v2202
      %2442 = vmatpush.bf16.msra.mxu0 %v2200
      %2443 = vmatpush.bf16.msra.mxu0 %v2198
      %2444 = vmatpush.bf16.msra.mxu0 %v2196
      %2445 = vmatmul.bf16.gmra.mxu0 %v1595
      %v2446 = vpop.f32.mrf.mxu0
      %v2447 = vadd.f32 %v2434, %v2446
      %v2448 = vpop.f32.mrf.mxu0
      %2449 = vdwg.mxu0
      %2450 = vmatpush.bf16.msra.mxu0 %v2226
      %2451 = vmatpush.bf16.msra.mxu0 %v2224
      %2452 = vmatpush.bf16.msra.mxu0 %v2222
      %2453 = vmatpush.bf16.msra.mxu0 %v2220
      %2454 = vmatpush.bf16.msra.mxu0 %v2218
      %2455 = vmatpush.bf16.msra.mxu0 %v2216
      %2456 = vmatpush.bf16.msra.mxu0 %v2214
      %2457 = vmatpush.bf16.msra.mxu0 %v2212
      %2458 = vmatmul.bf16.gmra.mxu0 %v1596
      %v2459 = vpop.f32.mrf.mxu0
      %v2460 = vadd.f32 %v2447, %v2459
      %v2461 = vpop.f32.mrf.mxu0
      %2462 = vdwg.mxu0
      %2463 = vmatpush.bf16.msra.mxu0 %v2242
      %2464 = vmatpush.bf16.msra.mxu0 %v2240
      %2465 = vmatpush.bf16.msra.mxu0 %v2238
      %2466 = vmatpush.bf16.msra.mxu0 %v2236
      %2467 = vmatpush.bf16.msra.mxu0 %v2234
      %2468 = vmatpush.bf16.msra.mxu0 %v2232
      %2469 = vmatpush.bf16.msra.mxu0 %v2230
      %2470 = vmatpush.bf16.msra.mxu0 %v2228
      %2471 = vmatmul.bf16.gmra.mxu0 %v1597
      %v2472 = vpop.f32.mrf.mxu0
      %v2473 = vadd.f32 %v2460, %v2472
      %v2474 = vpop.f32.mrf.mxu0
      %2475 = vdwg.mxu0
      %2476 = vmatpush.bf16.msra.mxu0 %v2131
      %2477 = vmatpush.bf16.msra.mxu0 %v2129
      %2478 = vmatpush.bf16.msra.mxu0 %v2127
      %2479 = vmatpush.bf16.msra.mxu0 %v2125
      %2480 = vmatpush.bf16.msra.mxu0 %v2123
      %2481 = vmatpush.bf16.msra.mxu0 %v2121
      %2482 = vmatpush.bf16.msra.mxu0 %v2119
      %2483 = vmatpush.bf16.msra.mxu0 %v2117
      %2484 = vmatmul.bf16.gmra.mxu0 %v1590
      %v2485 = vpop.f32.mrf.mxu0
      %v2486 = vadd.f32 %v1729, %v2485
      %v2487 = vpop.f32.mrf.mxu0
      %2488 = vdwg.mxu0
      %2489 = vmatpush.bf16.msra.mxu0 %v2147
      %2490 = vmatpush.bf16.msra.mxu0 %v2145
      %2491 = vmatpush.bf16.msra.mxu0 %v2143
      %2492 = vmatpush.bf16.msra.mxu0 %v2141
      %2493 = vmatpush.bf16.msra.mxu0 %v2139
      %2494 = vmatpush.bf16.msra.mxu0 %v2137
      %2495 = vmatpush.bf16.msra.mxu0 %v2135
      %2496 = vmatpush.bf16.msra.mxu0 %v2133
      %2497 = vmatmul.bf16.gmra.mxu0 %v1591
      %v2498 = vpop.f32.mrf.mxu0
      %v2499 = vadd.f32 %v2486, %v2498
      %v2500 = vpop.f32.mrf.mxu0
      %2501 = vdwg.mxu0
      %2502 = vmatpush.bf16.msra.mxu0 %v2163
      %2503 = vmatpush.bf16.msra.mxu0 %v2161
      %2504 = vmatpush.bf16.msra.mxu0 %v2159
      %2505 = vmatpush.bf16.msra.mxu0 %v2157
      %2506 = vmatpush.bf16.msra.mxu0 %v2155
      %2507 = vmatpush.bf16.msra.mxu0 %v2153
      %2508 = vmatpush.bf16.msra.mxu0 %v2151
      %2509 = vmatpush.bf16.msra.mxu0 %v2149
      %2510 = vmatmul.bf16.gmra.mxu0 %v1592
      %v2511 = vpop.f32.mrf.mxu0
      %v2512 = vadd.f32 %v2499, %v2511
      %v2513 = vpop.f32.mrf.mxu0
      %2514 = vdwg.mxu0
      %2515 = vmatpush.bf16.msra.mxu0 %v2179
      %2516 = vmatpush.bf16.msra.mxu0 %v2177
      %2517 = vmatpush.bf16.msra.mxu0 %v2175
      %2518 = vmatpush.bf16.msra.mxu0 %v2173
      %2519 = vmatpush.bf16.msra.mxu0 %v2171
      %2520 = vmatpush.bf16.msra.mxu0 %v2169
      %2521 = vmatpush.bf16.msra.mxu0 %v2167
      %2522 = vmatpush.bf16.msra.mxu0 %v2165
      %2523 = vmatmul.bf16.gmra.mxu0 %v1593
      %v2524 = vpop.f32.mrf.mxu0
      %v2525 = vadd.f32 %v2512, %v2524
      %v2526 = vpop.f32.mrf.mxu0
      %2527 = vdwg.mxu0
      %2528 = vmatpush.bf16.msra.mxu0 %v2195
      %2529 = vmatpush.bf16.msra.mxu0 %v2193
      %2530 = vmatpush.bf16.msra.mxu0 %v2191
      %2531 = vmatpush.bf16.msra.mxu0 %v2189
      %2532 = vmatpush.bf16.msra.mxu0 %v2187
      %2533 = vmatpush.bf16.msra.mxu0 %v2185
      %2534 = vmatpush.bf16.msra.mxu0 %v2183
      %2535 = vmatpush.bf16.msra.mxu0 %v2181
      %2536 = vmatmul.bf16.gmra.mxu0 %v1594
      %v2537 = vpop.f32.mrf.mxu0
      %v2538 = vadd.f32 %v2525, %v2537
      %v2539 = vpop.f32.mrf.mxu0
      %2540 = vdwg.mxu0
      %2541 = vmatpush.bf16.msra.mxu0 %v2211
      %2542 = vmatpush.bf16.msra.mxu0 %v2209
      %2543 = vmatpush.bf16.msra.mxu0 %v2207
      %2544 = vmatpush.bf16.msra.mxu0 %v2205
      %2545 = vmatpush.bf16.msra.mxu0 %v2203
      %2546 = vmatpush.bf16.msra.mxu0 %v2201
      %2547 = vmatpush.bf16.msra.mxu0 %v2199
      %2548 = vmatpush.bf16.msra.mxu0 %v2197
      %2549 = vmatmul.bf16.gmra.mxu0 %v1595
      %v2550 = vpop.f32.mrf.mxu0
      %v2551 = vadd.f32 %v2538, %v2550
      %v2552 = vpop.f32.mrf.mxu0
      %2553 = vdwg.mxu0
      %2554 = vmatpush.bf16.msra.mxu0 %v2227
      %2555 = vmatpush.bf16.msra.mxu0 %v2225
      %2556 = vmatpush.bf16.msra.mxu0 %v2223
      %2557 = vmatpush.bf16.msra.mxu0 %v2221
      %2558 = vmatpush.bf16.msra.mxu0 %v2219
      %2559 = vmatpush.bf16.msra.mxu0 %v2217
      %2560 = vmatpush.bf16.msra.mxu0 %v2215
      %2561 = vmatpush.bf16.msra.mxu0 %v2213
      %2562 = vmatmul.bf16.gmra.mxu0 %v1596
      %v2563 = vpop.f32.mrf.mxu0
      %v2564 = vadd.f32 %v2551, %v2563
      %v2565 = vpop.f32.mrf.mxu0
      %2566 = vdwg.mxu0
      %2567 = vmatpush.bf16.msra.mxu0 %v2243
      %2568 = vmatpush.bf16.msra.mxu0 %v2241
      %2569 = vmatpush.bf16.msra.mxu0 %v2239
      %2570 = vmatpush.bf16.msra.mxu0 %v2237
      %2571 = vmatpush.bf16.msra.mxu0 %v2235
      %2572 = vmatpush.bf16.msra.mxu0 %v2233
      %2573 = vmatpush.bf16.msra.mxu0 %v2231
      %2574 = vmatpush.bf16.msra.mxu0 %v2229
      %2575 = vmatmul.bf16.gmra.mxu0 %v1597
      %v2576 = vpop.f32.mrf.mxu0
      %v2577 = vadd.f32 %v2564, %v2576
      %v2578 = vpop.f32.mrf.mxu0
      %2579 = vdwg.mxu0
      %v2580 = vmax.f32 %v2473, 0.0
      %v2581 = vmax.f32 %v2577, 0.0
      %v2582 = vpack.c.bf16 %v2580, %v2580
      %v2583 = vpack.c.bf16 %v2581, %v2581
      %v2584 = vld [vmem:[%s5] sm:$0xf]
      %v2585 = vld [vmem:[%s5 + $0x4] sm:$0xf]
      %v2586 = vld [vmem:[%s5 + $0x8] sm:$0xf]
      %v2587 = vld [vmem:[%s5 + $0xc] sm:$0xf]
      %v2588 = vld [vmem:[%s5 + $0x10] sm:$0xf]
      %v2589 = vld [vmem:[%s5 + $0x14] sm:$0xf]
      %v2590 = vld [vmem:[%s5 + $0x18] sm:$0xf]
      %v2591 = vld [vmem:[%s5 + $0x1c] sm:$0xf]
      %v2592 = vld [vmem:[%s5 + $0x20] sm:$0xf]
      %v2593 = vld [vmem:[%s5 + $0x24] sm:$0xf]
      %v2594 = vld [vmem:[%s5 + $0x28] sm:$0xf]
      %v2595 = vld [vmem:[%s5 + $0x2c] sm:$0xf]
      %v2596 = vld [vmem:[%s5 + $0x30] sm:$0xf]
      %v2597 = vld [vmem:[%s5 + $0x34] sm:$0xf]
      %v2598 = vld [vmem:[%s5 + $0x38] sm:$0xf]
      %v2599 = vld [vmem:[%s5 + $0x3c] sm:$0xf]
      %v2600 = vld [vmem:[%s5 + $0x40] sm:$0xf]
      %v2601 = vld [vmem:[%s5 + $0x44] sm:$0xf]
      %v2602 = vld [vmem:[%s5 + $0x48] sm:$0xf]
      %v2603 = vld [vmem:[%s5 + $0x4c] sm:$0xf]
      %v2604 = vld [vmem:[%s5 + $0x50] sm:$0xf]
      %v2605 = vld [vmem:[%s5 + $0x54] sm:$0xf]
      %v2606 = vld [vmem:[%s5 + $0x58] sm:$0xf]
      %v2607 = vld [vmem:[%s5 + $0x5c] sm:$0xf]
      %v2608 = vld [vmem:[%s5 + $0x60] sm:$0xf]
      %v2609 = vld [vmem:[%s5 + $0x64] sm:$0xf]
      %v2610 = vld [vmem:[%s5 + $0x68] sm:$0xf]
      %v2611 = vld [vmem:[%s5 + $0x6c] sm:$0xf]
      %v2612 = vld [vmem:[%s5 + $0x70] sm:$0xf]
      %v2613 = vld [vmem:[%s5 + $0x74] sm:$0xf]
      %v2614 = vld [vmem:[%s5 + $0x78] sm:$0xf]
      %v2615 = vld [vmem:[%s5 + $0x7c] sm:$0xf]
      %v2616 = vld [vmem:[%s6] sm:$0x1]
      %v2618 = vperm.slane %v2616, 0
      %v2652 = vunpack.c.l.b16 %v2584
      %v2653 = vunpack.c.l.b16 %v2585
      %v2654 = vunpack.c.l.b16 %v2586
      %v2655 = vunpack.c.l.b16 %v2587
      %v2656 = vunpack.c.l.b16 %v2588
      %v2657 = vunpack.c.l.b16 %v2589
      %v2658 = vunpack.c.l.b16 %v2590
      %v2659 = vunpack.c.l.b16 %v2591
      %v2660 = vunpack.c.l.b16 %v2592
      %v2661 = vunpack.c.l.b16 %v2593
      %v2662 = vunpack.c.l.b16 %v2594
      %v2663 = vunpack.c.l.b16 %v2595
      %v2664 = vunpack.c.l.b16 %v2596
      %v2665 = vunpack.c.l.b16 %v2597
      %v2666 = vunpack.c.l.b16 %v2598
      %v2667 = vunpack.c.l.b16 %v2599
      %v2668 = vunpack.c.l.b16 %v2600
      %v2669 = vunpack.c.l.b16 %v2601
      %v2670 = vunpack.c.l.b16 %v2602
      %v2671 = vunpack.c.l.b16 %v2603
      %v2672 = vunpack.c.l.b16 %v2604
      %v2673 = vunpack.c.l.b16 %v2605
      %v2674 = vunpack.c.l.b16 %v2606
      %v2675 = vunpack.c.l.b16 %v2607
      %v2676 = vunpack.c.l.b16 %v2608
      %v2677 = vunpack.c.l.b16 %v2609
      %v2678 = vunpack.c.l.b16 %v2610
      %v2679 = vunpack.c.l.b16 %v2611
      %v2680 = vunpack.c.l.b16 %v2612
      %v2681 = vunpack.c.l.b16 %v2613
      %v2682 = vunpack.c.l.b16 %v2614
      %v2683 = vunpack.c.l.b16 %v2615
      %v2684 = vpack.c.b16 %v2653, %v2652
      %v2685 = vpack.c.b16 %v2655, %v2654
      %v2686 = vpack.c.b16 %v2657, %v2656
      %v2687 = vpack.c.b16 %v2659, %v2658
      %v2688 = vpack.c.b16 %v2661, %v2660
      %v2689 = vpack.c.b16 %v2663, %v2662
      %v2690 = vpack.c.b16 %v2665, %v2664
      %v2691 = vpack.c.b16 %v2667, %v2666
      %v2692 = vpack.c.b16 %v2669, %v2668
      %v2693 = vpack.c.b16 %v2671, %v2670
      %v2694 = vpack.c.b16 %v2673, %v2672
      %v2695 = vpack.c.b16 %v2675, %v2674
      %v2696 = vpack.c.b16 %v2677, %v2676
      %v2697 = vpack.c.b16 %v2679, %v2678
      %v2698 = vpack.c.b16 %v2681, %v2680
      %v2699 = vpack.c.b16 %v2683, %v2682
      %2716 = vmatpush.bf16.msra.mxu0 %v2691
      %2717 = vmatpush.bf16.msra.mxu0 %v2690
      %2718 = vmatpush.bf16.msra.mxu0 %v2689
      %2719 = vmatpush.bf16.msra.mxu0 %v2688
      %2720 = vmatpush.bf16.msra.mxu0 %v2687
      %2721 = vmatpush.bf16.msra.mxu0 %v2686
      %2722 = vmatpush.bf16.msra.mxu0 %v2685
      %2723 = vmatpush.bf16.msra.mxu0 %v2684
      %2724 = vmatmul.bf16.gmra.mxu0 %v2582
      %v2725 = vpop.f32.mrf.mxu0
      %v2726 = vadd.f32 %v2618, %v2725
      %v2727 = vpop.f32.mrf.mxu0
      %2728 = vdwg.mxu0
      %2729 = vmatpush.bf16.msra.mxu0 %v2699
      %2730 = vmatpush.bf16.msra.mxu0 %v2698
      %2731 = vmatpush.bf16.msra.mxu0 %v2697
      %2732 = vmatpush.bf16.msra.mxu0 %v2696
      %2733 = vmatpush.bf16.msra.mxu0 %v2695
      %2734 = vmatpush.bf16.msra.mxu0 %v2694
      %2735 = vmatpush.bf16.msra.mxu0 %v2693
      %2736 = vmatpush.bf16.msra.mxu0 %v2692
      %2737 = vmatmul.bf16.gmra.mxu0 %v2583
      %v2738 = vpop.f32.mrf.mxu0
      %v2739 = vadd.f32 %v2726, %v2738
      %v2740 = vpop.f32.mrf.mxu0
      %2741 = vdwg.mxu0
      %2742 = vst [vmem:[#allocation11] sm:$0xff] %v2739
    $region53: #{ac_forward.1} parent=1 // pred_fallthru
      _
    // Predicated region
    $region54: #{ac_forward.1} parent=1 // pred_check
      _
    $region55: #{ac_forward.1} parent=1 // pred_check_branch
      %2744 = sbr.rel (0) target = $region57
    $region56: #{ac_forward.1} parent=1 // pred_region
      %2746 = vsyncadd [#allocation5], 96
      %s2747 = sshll.u32 [#allocation11], 4
      %s2748 = int_to_ptr.vmem [resolvable:$true] %s2747
      %s2749 = sshll.u32 %s7, 4
      %s2750 = int_to_ptr.hbm [resolvable:$true] %s2749
      %2755 = dma.vmem_to_hbm [thread:$0]  %s2748, 32, %s2750, [#allocation5], 32, 32, 2
    $region57: #{ac_forward.1} parent=1 // pred_fallthru
      _
    // Predicated region
    $region58: #{ac_forward.1} parent=1 // pred_check
      _
    $region59: #{ac_forward.1} parent=1 // pred_check_branch
      %2757 = sbr.rel (0) target = $region61
    $region60: #{ac_forward.1} parent=1 // pred_region
      %2759 = dma.done [#allocation5], 128
    $region61: #{ac_forward.1} parent=1 // pred_fallthru
      _
    %2760 = vsyncpa [#allocation4], 1
    %2761 = vsyncpa [#allocation7], 1
    %2762 = vsyncpa [#allocation10], 1
    %2763 = vsyncpa [#allocation5], 1

</llo_original>
